<compile_context>
chip_gen: v6e
topology: v6e:2x2x1
jax: 0.10.0
libtpu: 0.0.40
codegen_flags: <defaults>
</compile_context>

<pallas_src>
import math
from functools import partial

import jax
import jax.numpy as jnp
from jax.experimental import pallas as pl
from jax.experimental.pallas import tpu as pltpu


# ----------------------------- in-kernel helpers -----------------------------

def _layernorm(x, gamma, beta, eps=1e-5):
    # PyTorch nn.LayerNorm: biased variance over last dim, eps inside sqrt. f32 math.
    mu = jnp.mean(x, axis=-1, keepdims=True)
    var = jnp.mean((x - mu) ** 2, axis=-1, keepdims=True)
    return (x - mu) * jax.lax.rsqrt(var + eps) * gamma + beta


def _gelu_exact(x):
    # PyTorch nn.GELU() default: exact erf-based GELU. f32 math.
    return 0.5 * x * (1.0 + jax.lax.erf(x * 0.7071067811865476))


# --------------------------------- kernel ------------------------------------

def transformer_block_kernel(
    x_ref,                                   # (N, D)  N = B*T, f32
    g1_ref, b1_ref, g2_ref, b2_ref,          # (1, D)  f32
    wqkv_ref, bqkv_ref,                      # (D, 3D) bf16, (1, 3D) f32
    wo_ref, bo_ref,                          # (D, D)  bf16, (1, D)  f32
    w1_ref, bb1_ref,                         # (D, 4D) bf16, (1, 4D) f32
    w2_ref, bb2_ref,                         # (4D, D) bf16, (1, D)  f32
    o_ref,                                   # (N, D)  f32
    ctx_ref,                                 # scratch: (N, D) f32
    *, batch, seq, num_heads, causal,
):
    B, T, H = batch, seq, num_heads
    D = x_ref.shape[1]
    hd = D // H
    scale = 1.0 / math.sqrt(hd)
    bf16 = jnp.bfloat16

    x = x_ref[...].astype(jnp.float32)                       # (N, D)

    # ---- hidden_state = layer_norm_1(x); x = x + attention(hidden_state) ----
    h = _layernorm(x, g1_ref[...], b1_ref[...])

    # Fused QKV projection: one MXU pass with N = 3D.
    qkv = jnp.dot(h.astype(bf16), wqkv_ref[...],
                  preferred_element_type=jnp.float32) + bqkv_ref[...]
    q, k, v = qkv[:, :D], qkv[:, D:2 * D], qkv[:, 2 * D:]     # (N, D) each

    if causal:
        row = jax.lax.broadcasted_iota(jnp.int32, (T, T), 0)
        col = jax.lax.broadcasted_iota(jnp.int32, (T, T), 1)
        future = col > row                                    # bool (T, T)

    # Per-head attention, batched over B; contexts written to VMEM scratch at
    # static lane offsets (no concatenate / relayout copies).
    for hh in range(H):                                       # static unroll, H small
        sl = slice(hh * hd, (hh + 1) * hd)
        qs = q[:, sl].reshape(B, T, hd)                       # leading-dim split only
        ks = k[:, sl].reshape(B, T, hd)
        vs = v[:, sl].reshape(B, T, hd)

        s = jnp.einsum('bqd,bkd->bqk', qs.astype(bf16), ks.astype(bf16),
                       preferred_element_type=jnp.float32) * scale
        if causal:
            s = jnp.where(future[None], -1e30, s)
        s = s - jnp.max(s, axis=-1, keepdims=True)            # stable softmax (f32)
        p = jnp.exp(s)
        denom = jnp.sum(p, axis=-1, keepdims=True)
        p = p * pl.reciprocal(denom, approx=True)             # EUP, ~free

        c = jnp.einsum('bqk,bkd->bqd', p.astype(bf16), vs.astype(bf16),
                       preferred_element_type=jnp.float32)    # (B, T, hd)
        ctx_ref[:, sl] = c.reshape(B * T, hd)

    attn_out = jnp.dot(ctx_ref[...].astype(bf16), wo_ref[...],
                       preferred_element_type=jnp.float32) + bo_ref[...]
    x = x + attn_out

    # ---- x = x + feed_forward(layer_norm_2(x));  dropout == identity (eval) ----
    h2 = _layernorm(x, g2_ref[...], b2_ref[...])
    f = jnp.dot(h2.astype(bf16), w1_ref[...],
                preferred_element_type=jnp.float32) + bb1_ref[...]
    f = _gelu_exact(f)
    f = jnp.dot(f.astype(bf16), w2_ref[...],
                preferred_element_type=jnp.float32) + bb2_ref[...]
    x = x + f

    o_ref[...] = x.astype(o_ref.dtype)


# -------------------------------- wrapper ------------------------------------

def transformer_block(x, params, *, num_heads, causal=True):
    B, T, D = x.shape
    N = B * T
    x2 = x.reshape(N, D)                                      # fold batch into M rows

    bf16 = jnp.bfloat16
    wqkv = jnp.concatenate([params["wq"], params["wk"], params["wv"]], axis=1).astype(bf16)
    bqkv = jnp.concatenate([params["bq"], params["bk"], params["bv"]], axis=1).astype(jnp.float32)

    args = [
        x2,
        params["g1"], params["b1"], params["g2"], params["b2"],
        wqkv, bqkv,
        params["wo"].astype(bf16), params["bo"],
        params["w1"].astype(bf16), params["bb1"],
        params["w2"].astype(bf16), params["bb2"],
    ]

    vmem = pl.BlockSpec(memory_space=pltpu.MemorySpace.VMEM)  # whole array resident once
    out = pl.pallas_call(
        partial(transformer_block_kernel,
                batch=B, seq=T, num_heads=num_heads, causal=causal),
        out_shape=jax.ShapeDtypeStruct((N, D), x.dtype),
        in_specs=[vmem] * len(args),
        out_specs=vmem,
        scratch_shapes=[pltpu.VMEM((N, D), jnp.float32)],     # per-head context slab
    )(*args)
    return out.reshape(B, T, D)


# ---------------------------- parameter creation ------------------------------

def init_params(key, embed_dim, num_heads):
    D = embed_dim
    I = 4 * D
    ks = jax.random.split(key, 8)
    std = 0.02
    f32 = jnp.float32

    def mat(k, shape):
        return (std * jax.random.normal(k, shape)).astype(f32)

    params = {
        # LayerNorm 1 / 2  (gamma=1, beta=0 like nn.LayerNorm defaults)
        "g1": jnp.ones((1, D), f32), "b1": jnp.zeros((1, D), f32),
        "g2": jnp.ones((1, D), f32), "b2": jnp.zeros((1, D), f32),
        # attention projections (stored as [in, out])
        "wq": mat(ks[0], (D, D)), "bq": jnp.zeros((1, D), f32),
        "wk": mat(ks[1], (D, D)), "bk": jnp.zeros((1, D), f32),
        "wv": mat(ks[2], (D, D)), "bv": jnp.zeros((1, D), f32),
        "wo": mat(ks[3], (D, D)), "bo": jnp.zeros((1, D), f32),
        # feed-forward
        "w1": mat(ks[4], (D, I)), "bb1": jnp.zeros((1, I), f32),
        "w2": mat(ks[5], (I, D)), "bb2": jnp.zeros((1, D), f32),
    }
    return params


# ----------------------------------- main -------------------------------------

if __name__ == "__main__":
    # Small config consistent with TransformerConfig:
    #   embed_dim=32, window_size(seq)=8, attention_head_size(num heads)=4, batch=2.
    B, T, D, H = 2, 8, 32, 4

    key = jax.random.PRNGKey(0)
    kx, kp = jax.random.split(key)
    x = jax.random.normal(kx, (B, T, D), dtype=jnp.float32)
    params = init_params(kp, D, H)

    out = transformer_block(x, params, num_heads=H, causal=True)
    out = jax.block_until_ready(out)
    assert out.shape == (B, T, D) and out.dtype == jnp.float32
    print("KERNEL_OK")
</pallas_src>

<mosaic_0001>
module attributes {stable_mosaic.version = 11 : i64} {
  func.func @transformer_block_kernel(%arg0: memref<16x32xf32, #tpu.memory_space<vmem>>, %arg1: memref<1x32xf32, #tpu.memory_space<vmem>>, %arg2: memref<1x32xf32, #tpu.memory_space<vmem>>, %arg3: memref<1x32xf32, #tpu.memory_space<vmem>>, %arg4: memref<1x32xf32, #tpu.memory_space<vmem>>, %arg5: memref<32x96xbf16, #tpu.memory_space<vmem>>, %arg6: memref<1x96xf32, #tpu.memory_space<vmem>>, %arg7: memref<32x32xbf16, #tpu.memory_space<vmem>>, %arg8: memref<1x32xf32, #tpu.memory_space<vmem>>, %arg9: memref<32x128xbf16, #tpu.memory_space<vmem>>, %arg10: memref<1x128xf32, #tpu.memory_space<vmem>>, %arg11: memref<128x32xbf16, #tpu.memory_space<vmem>>, %arg12: memref<1x32xf32, #tpu.memory_space<vmem>>, %arg13: memref<16x32xf32, #tpu.memory_space<vmem>>, %arg14: memref<16x32xf32, #tpu.memory_space<vmem>>) attributes {dimension_semantics = [], scalar_prefetch = 0 : i64, scratch_operands = 1 : i64, tpu.core_type = #tpu.core_type<tc>} {
    %c0 = arith.constant 0 : index
    %c0_0 = arith.constant 0 : index
    %0 = vector.load %arg0[%c0, %c0_0] : memref<16x32xf32, #tpu.memory_space<vmem>>, vector<16x32xf32>
    %c0_1 = arith.constant 0 : index
    %c0_2 = arith.constant 0 : index
    %1 = vector.load %arg1[%c0_1, %c0_2] : memref<1x32xf32, #tpu.memory_space<vmem>>, vector<1x32xf32>
    %c0_3 = arith.constant 0 : index
    %c0_4 = arith.constant 0 : index
    %2 = vector.load %arg2[%c0_3, %c0_4] : memref<1x32xf32, #tpu.memory_space<vmem>>, vector<1x32xf32>
    %cst = arith.constant dense<0.000000e+00> : vector<16xf32>
    %3 = vector.multi_reduction <add>, %0, %cst [1] : vector<16x32xf32> to vector<16xf32>
    %4 = vector.shape_cast %3 : vector<16xf32> to vector<16x1xf32>
    %cst_5 = arith.constant 3.200000e+01 : f32
    %5 = vector.broadcast %cst_5 : f32 to vector<16x1xf32>
    %6 = arith.divf %4, %5 : vector<16x1xf32>
    %7 = vector.broadcast %6 : vector<16x1xf32> to vector<16x32xf32>
    %8 = arith.subf %0, %7 : vector<16x32xf32>
    %9 = arith.mulf %8, %8 : vector<16x32xf32>
    %cst_6 = arith.constant dense<0.000000e+00> : vector<16xf32>
    %10 = vector.multi_reduction <add>, %9, %cst_6 [1] : vector<16x32xf32> to vector<16xf32>
    %11 = vector.shape_cast %10 : vector<16xf32> to vector<16x1xf32>
    %cst_7 = arith.constant 3.200000e+01 : f32
    %12 = vector.broadcast %cst_7 : f32 to vector<16x1xf32>
    %13 = arith.divf %11, %12 : vector<16x1xf32>
    %14 = vector.broadcast %6 : vector<16x1xf32> to vector<16x32xf32>
    %15 = arith.subf %0, %14 : vector<16x32xf32>
    %cst_8 = arith.constant 9.99999974E-6 : f32
    %16 = vector.broadcast %cst_8 : f32 to vector<16x1xf32>
    %17 = arith.addf %13, %16 : vector<16x1xf32>
    %18 = math.rsqrt %17 : vector<16x1xf32>
    %19 = vector.broadcast %18 : vector<16x1xf32> to vector<16x32xf32>
    %20 = arith.mulf %15, %19 : vector<16x32xf32>
    %21 = vector.broadcast %1 : vector<1x32xf32> to vector<16x32xf32>
    %22 = arith.mulf %20, %21 : vector<16x32xf32>
    %23 = vector.broadcast %2 : vector<1x32xf32> to vector<16x32xf32>
    %24 = arith.addf %22, %23 : vector<16x32xf32>
    %25 = arith.truncf %24 : vector<16x32xf32> to vector<16x32xbf16>
    %c0_9 = arith.constant 0 : index
    %c0_10 = arith.constant 0 : index
    %26 = vector.load %arg5[%c0_9, %c0_10] : memref<32x96xbf16, #tpu.memory_space<vmem>>, vector<32x96xbf16>
    %cst_11 = arith.constant dense<0.000000e+00> : vector<16x96xf32>
    %27 = tpu.matmul %25, %26, %cst_11 {dimension_numbers = #tpu.dot_dimension_numbers<[1], [0], [0], [1], [0, 0, 1, 1], [], []>} : vector<16x32xbf16>, vector<32x96xbf16>, vector<16x96xf32> -> vector<16x96xf32>
    %c0_12 = arith.constant 0 : index
    %c0_13 = arith.constant 0 : index
    %28 = vector.load %arg6[%c0_12, %c0_13] : memref<1x96xf32, #tpu.memory_space<vmem>>, vector<1x96xf32>
    %29 = vector.broadcast %28 : vector<1x96xf32> to vector<16x96xf32>
    %30 = arith.addf %27, %29 : vector<16x96xf32>
    %31 = vector.extract_strided_slice %30 {offsets = [0, 0], sizes = [16, 32], strides = [1, 1]} : vector<16x96xf32> to vector<16x32xf32>
    %32 = vector.extract_strided_slice %30 {offsets = [0, 32], sizes = [16, 32], strides = [1, 1]} : vector<16x96xf32> to vector<16x32xf32>
    %33 = vector.extract_strided_slice %30 {offsets = [0, 64], sizes = [16, 32], strides = [1, 1]} : vector<16x96xf32> to vector<16x32xf32>
    %34 = tpu.iota {dimensions = array<i32: 0>} : vector<8x8xi32>
    %35 = tpu.iota {dimensions = array<i32: 1>} : vector<8x8xi32>
    %36 = arith.cmpi sgt, %35, %34 : vector<8x8xi32>
    %37 = vector.extract_strided_slice %31 {offsets = [0, 0], sizes = [16, 8], strides = [1, 1]} : vector<16x32xf32> to vector<16x8xf32>
    %38 = vector.shape_cast %37 : vector<16x8xf32> to vector<2x8x8xf32>
    %39 = vector.extract_strided_slice %32 {offsets = [0, 0], sizes = [16, 8], strides = [1, 1]} : vector<16x32xf32> to vector<16x8xf32>
    %40 = vector.shape_cast %39 : vector<16x8xf32> to vector<2x8x8xf32>
    %41 = vector.extract_strided_slice %33 {offsets = [0, 0], sizes = [16, 8], strides = [1, 1]} : vector<16x32xf32> to vector<16x8xf32>
    %42 = vector.shape_cast %41 : vector<16x8xf32> to vector<2x8x8xf32>
    %43 = arith.truncf %38 : vector<2x8x8xf32> to vector<2x8x8xbf16>
    %44 = arith.truncf %40 : vector<2x8x8xf32> to vector<2x8x8xbf16>
    "tpu.trace_start"() <{level = 10 : i32, message = "bqd,bkd->bqk"}> : () -> ()
    %cst_14 = arith.constant dense<0.000000e+00> : vector<2x8x8xf32>
    %45 = tpu.matmul %43, %44, %cst_14 {dimension_numbers = #tpu.dot_dimension_numbers<[2], [2], [1], [1], [0, 0, 0, 1, 1, 1], [0], [0]>} : vector<2x8x8xbf16>, vector<2x8x8xbf16>, vector<2x8x8xf32> -> vector<2x8x8xf32>
    "tpu.trace_stop"() : () -> ()
    %cst_15 = arith.constant 0.353553385 : f32
    %46 = vector.broadcast %cst_15 : f32 to vector<2x8x8xf32>
    %47 = arith.mulf %45, %46 : vector<2x8x8xf32>
    %48 = vector.shape_cast %36 : vector<8x8xi1> to vector<1x8x8xi1>
    %cst_16 = arith.constant -1.000000e+30 : f32
    %49 = vector.shape_cast %48 : vector<1x8x8xi1> to vector<1x8x8xi1>
    %50 = vector.broadcast %49 : vector<1x8x8xi1> to vector<2x8x8xi1>
    %51 = vector.broadcast %cst_16 : f32 to vector<2x8x8xf32>
    %52 = arith.select %50, %51, %47 : vector<2x8x8xi1>, vector<2x8x8xf32>
    %cst_17 = arith.constant dense<0xFF800000> : vector<2x8xf32>
    %53 = vector.multi_reduction <maximumf>, %52, %cst_17 [2] : vector<2x8x8xf32> to vector<2x8xf32>
    %54 = vector.shape_cast %53 : vector<2x8xf32> to vector<2x8x1xf32>
    %55 = vector.broadcast %54 : vector<2x8x1xf32> to vector<2x8x8xf32>
    %56 = arith.subf %52, %55 : vector<2x8x8xf32>
    %57 = math.exp %56 : vector<2x8x8xf32>
    %cst_18 = arith.constant dense<0.000000e+00> : vector<2x8xf32>
    %58 = vector.multi_reduction <add>, %57, %cst_18 [2] : vector<2x8x8xf32> to vector<2x8xf32>
    %59 = vector.shape_cast %58 : vector<2x8xf32> to vector<2x8x1xf32>
    %60 = tpu.reciprocal %59 {approx = true} : vector<2x8x1xf32> -> vector<2x8x1xf32>
    %61 = vector.broadcast %60 : vector<2x8x1xf32> to vector<2x8x8xf32>
    %62 = arith.mulf %57, %61 : vector<2x8x8xf32>
    %63 = arith.truncf %62 : vector<2x8x8xf32> to vector<2x8x8xbf16>
    %64 = arith.truncf %42 : vector<2x8x8xf32> to vector<2x8x8xbf16>
    "tpu.trace_start"() <{level = 10 : i32, message = "bqk,bkd->bqd"}> : () -> ()
    %cst_19 = arith.constant dense<0.000000e+00> : vector<2x8x8xf32>
    %65 = tpu.matmul %63, %64, %cst_19 {dimension_numbers = #tpu.dot_dimension_numbers<[2], [1], [1], [2], [0, 0, 0, 1, 1, 2], [0], [0]>} : vector<2x8x8xbf16>, vector<2x8x8xbf16>, vector<2x8x8xf32> -> vector<2x8x8xf32>
    "tpu.trace_stop"() : () -> ()
    %66 = vector.shape_cast %65 : vector<2x8x8xf32> to vector<16x8xf32>
    %c0_20 = arith.constant 0 : index
    %c0_21 = arith.constant 0 : index
    %67 = vector.load %arg14[%c0_20, %c0_21] : memref<16x32xf32, #tpu.memory_space<vmem>>, vector<16x8xf32>
    tpu.vector_store %arg14[%c0_20, %c0_21], %66 {strides = array<i32>} : memref<16x32xf32, #tpu.memory_space<vmem>>, vector<16x8xf32>,
    %68 = vector.extract_strided_slice %31 {offsets = [0, 8], sizes = [16, 8], strides = [1, 1]} : vector<16x32xf32> to vector<16x8xf32>
    %69 = vector.shape_cast %68 : vector<16x8xf32> to vector<2x8x8xf32>
    %70 = vector.extract_strided_slice %32 {offsets = [0, 8], sizes = [16, 8], strides = [1, 1]} : vector<16x32xf32> to vector<16x8xf32>
    %71 = vector.shape_cast %70 : vector<16x8xf32> to vector<2x8x8xf32>
    %72 = vector.extract_strided_slice %33 {offsets = [0, 8], sizes = [16, 8], strides = [1, 1]} : vector<16x32xf32> to vector<16x8xf32>
    %73 = vector.shape_cast %72 : vector<16x8xf32> to vector<2x8x8xf32>
    %74 = arith.truncf %69 : vector<2x8x8xf32> to vector<2x8x8xbf16>
    %75 = arith.truncf %71 : vector<2x8x8xf32> to vector<2x8x8xbf16>
    "tpu.trace_start"() <{level = 10 : i32, message = "bqd,bkd->bqk"}> : () -> ()
    %cst_22 = arith.constant dense<0.000000e+00> : vector<2x8x8xf32>
    %76 = tpu.matmul %74, %75, %cst_22 {dimension_numbers = #tpu.dot_dimension_numbers<[2], [2], [1], [1], [0, 0, 0, 1, 1, 1], [0], [0]>} : vector<2x8x8xbf16>, vector<2x8x8xbf16>, vector<2x8x8xf32> -> vector<2x8x8xf32>
    "tpu.trace_stop"() : () -> ()
    %cst_23 = arith.constant 0.353553385 : f32
    %77 = vector.broadcast %cst_23 : f32 to vector<2x8x8xf32>
    %78 = arith.mulf %76, %77 : vector<2x8x8xf32>
    %79 = vector.shape_cast %36 : vector<8x8xi1> to vector<1x8x8xi1>
    %cst_24 = arith.constant -1.000000e+30 : f32
    %80 = vector.shape_cast %79 : vector<1x8x8xi1> to vector<1x8x8xi1>
    %81 = vector.broadcast %80 : vector<1x8x8xi1> to vector<2x8x8xi1>
    %82 = vector.broadcast %cst_24 : f32 to vector<2x8x8xf32>
    %83 = arith.select %81, %82, %78 : vector<2x8x8xi1>, vector<2x8x8xf32>
    %cst_25 = arith.constant dense<0xFF800000> : vector<2x8xf32>
    %84 = vector.multi_reduction <maximumf>, %83, %cst_25 [2] : vector<2x8x8xf32> to vector<2x8xf32>
    %85 = vector.shape_cast %84 : vector<2x8xf32> to vector<2x8x1xf32>
    %86 = vector.broadcast %85 : vector<2x8x1xf32> to vector<2x8x8xf32>
    %87 = arith.subf %83, %86 : vector<2x8x8xf32>
    %88 = math.exp %87 : vector<2x8x8xf32>
    %cst_26 = arith.constant dense<0.000000e+00> : vector<2x8xf32>
    %89 = vector.multi_reduction <add>, %88, %cst_26 [2] : vector<2x8x8xf32> to vector<2x8xf32>
    %90 = vector.shape_cast %89 : vector<2x8xf32> to vector<2x8x1xf32>
    %91 = tpu.reciprocal %90 {approx = true} : vector<2x8x1xf32> -> vector<2x8x1xf32>
    %92 = vector.broadcast %91 : vector<2x8x1xf32> to vector<2x8x8xf32>
    %93 = arith.mulf %88, %92 : vector<2x8x8xf32>
    %94 = arith.truncf %93 : vector<2x8x8xf32> to vector<2x8x8xbf16>
    %95 = arith.truncf %73 : vector<2x8x8xf32> to vector<2x8x8xbf16>
    "tpu.trace_start"() <{level = 10 : i32, message = "bqk,bkd->bqd"}> : () -> ()
    %cst_27 = arith.constant dense<0.000000e+00> : vector<2x8x8xf32>
    %96 = tpu.matmul %94, %95, %cst_27 {dimension_numbers = #tpu.dot_dimension_numbers<[2], [1], [1], [2], [0, 0, 0, 1, 1, 2], [0], [0]>} : vector<2x8x8xbf16>, vector<2x8x8xbf16>, vector<2x8x8xf32> -> vector<2x8x8xf32>
    "tpu.trace_stop"() : () -> ()
    %97 = vector.shape_cast %96 : vector<2x8x8xf32> to vector<16x8xf32>
    %c0_28 = arith.constant 0 : index
    %c8 = arith.constant 8 : index
    %98 = vector.load %arg14[%c0_28, %c8] : memref<16x32xf32, #tpu.memory_space<vmem>>, vector<16x8xf32>
    tpu.vector_store %arg14[%c0_28, %c8], %97 {strides = array<i32>} : memref<16x32xf32, #tpu.memory_space<vmem>>, vector<16x8xf32>,
    %99 = vector.extract_strided_slice %31 {offsets = [0, 16], sizes = [16, 8], strides = [1, 1]} : vector<16x32xf32> to vector<16x8xf32>
    %100 = vector.shape_cast %99 : vector<16x8xf32> to vector<2x8x8xf32>
    %101 = vector.extract_strided_slice %32 {offsets = [0, 16], sizes = [16, 8], strides = [1, 1]} : vector<16x32xf32> to vector<16x8xf32>
    %102 = vector.shape_cast %101 : vector<16x8xf32> to vector<2x8x8xf32>
    %103 = vector.extract_strided_slice %33 {offsets = [0, 16], sizes = [16, 8], strides = [1, 1]} : vector<16x32xf32> to vector<16x8xf32>
    %104 = vector.shape_cast %103 : vector<16x8xf32> to vector<2x8x8xf32>
    %105 = arith.truncf %100 : vector<2x8x8xf32> to vector<2x8x8xbf16>
    %106 = arith.truncf %102 : vector<2x8x8xf32> to vector<2x8x8xbf16>
    "tpu.trace_start"() <{level = 10 : i32, message = "bqd,bkd->bqk"}> : () -> ()
    %cst_29 = arith.constant dense<0.000000e+00> : vector<2x8x8xf32>
    %107 = tpu.matmul %105, %106, %cst_29 {dimension_numbers = #tpu.dot_dimension_numbers<[2], [2], [1], [1], [0, 0, 0, 1, 1, 1], [0], [0]>} : vector<2x8x8xbf16>, vector<2x8x8xbf16>, vector<2x8x8xf32> -> vector<2x8x8xf32>
    "tpu.trace_stop"() : () -> ()
    %cst_30 = arith.constant 0.353553385 : f32
    %108 = vector.broadcast %cst_30 : f32 to vector<2x8x8xf32>
    %109 = arith.mulf %107, %108 : vector<2x8x8xf32>
    %110 = vector.shape_cast %36 : vector<8x8xi1> to vector<1x8x8xi1>
    %cst_31 = arith.constant -1.000000e+30 : f32
    %111 = vector.shape_cast %110 : vector<1x8x8xi1> to vector<1x8x8xi1>
    %112 = vector.broadcast %111 : vector<1x8x8xi1> to vector<2x8x8xi1>
    %113 = vector.broadcast %cst_31 : f32 to vector<2x8x8xf32>
    %114 = arith.select %112, %113, %109 : vector<2x8x8xi1>, vector<2x8x8xf32>
    %cst_32 = arith.constant dense<0xFF800000> : vector<2x8xf32>
    %115 = vector.multi_reduction <maximumf>, %114, %cst_32 [2] : vector<2x8x8xf32> to vector<2x8xf32>
    %116 = vector.shape_cast %115 : vector<2x8xf32> to vector<2x8x1xf32>
    %117 = vector.broadcast %116 : vector<2x8x1xf32> to vector<2x8x8xf32>
    %118 = arith.subf %114, %117 : vector<2x8x8xf32>
    %119 = math.exp %118 : vector<2x8x8xf32>
    %cst_33 = arith.constant dense<0.000000e+00> : vector<2x8xf32>
    %120 = vector.multi_reduction <add>, %119, %cst_33 [2] : vector<2x8x8xf32> to vector<2x8xf32>
    %121 = vector.shape_cast %120 : vector<2x8xf32> to vector<2x8x1xf32>
    %122 = tpu.reciprocal %121 {approx = true} : vector<2x8x1xf32> -> vector<2x8x1xf32>
    %123 = vector.broadcast %122 : vector<2x8x1xf32> to vector<2x8x8xf32>
    %124 = arith.mulf %119, %123 : vector<2x8x8xf32>
    %125 = arith.truncf %124 : vector<2x8x8xf32> to vector<2x8x8xbf16>
    %126 = arith.truncf %104 : vector<2x8x8xf32> to vector<2x8x8xbf16>
    "tpu.trace_start"() <{level = 10 : i32, message = "bqk,bkd->bqd"}> : () -> ()
    %cst_34 = arith.constant dense<0.000000e+00> : vector<2x8x8xf32>
    %127 = tpu.matmul %125, %126, %cst_34 {dimension_numbers = #tpu.dot_dimension_numbers<[2], [1], [1], [2], [0, 0, 0, 1, 1, 2], [0], [0]>} : vector<2x8x8xbf16>, vector<2x8x8xbf16>, vector<2x8x8xf32> -> vector<2x8x8xf32>
    "tpu.trace_stop"() : () -> ()
    %128 = vector.shape_cast %127 : vector<2x8x8xf32> to vector<16x8xf32>
    %c0_35 = arith.constant 0 : index
    %c16 = arith.constant 16 : index
    %129 = vector.load %arg14[%c0_35, %c16] : memref<16x32xf32, #tpu.memory_space<vmem>>, vector<16x8xf32>
    tpu.vector_store %arg14[%c0_35, %c16], %128 {strides = array<i32>} : memref<16x32xf32, #tpu.memory_space<vmem>>, vector<16x8xf32>,
    %130 = vector.extract_strided_slice %31 {offsets = [0, 24], sizes = [16, 8], strides = [1, 1]} : vector<16x32xf32> to vector<16x8xf32>
    %131 = vector.shape_cast %130 : vector<16x8xf32> to vector<2x8x8xf32>
    %132 = vector.extract_strided_slice %32 {offsets = [0, 24], sizes = [16, 8], strides = [1, 1]} : vector<16x32xf32> to vector<16x8xf32>
    %133 = vector.shape_cast %132 : vector<16x8xf32> to vector<2x8x8xf32>
    %134 = vector.extract_strided_slice %33 {offsets = [0, 24], sizes = [16, 8], strides = [1, 1]} : vector<16x32xf32> to vector<16x8xf32>
    %135 = vector.shape_cast %134 : vector<16x8xf32> to vector<2x8x8xf32>
    %136 = arith.truncf %131 : vector<2x8x8xf32> to vector<2x8x8xbf16>
    %137 = arith.truncf %133 : vector<2x8x8xf32> to vector<2x8x8xbf16>
    "tpu.trace_start"() <{level = 10 : i32, message = "bqd,bkd->bqk"}> : () -> ()
    %cst_36 = arith.constant dense<0.000000e+00> : vector<2x8x8xf32>
    %138 = tpu.matmul %136, %137, %cst_36 {dimension_numbers = #tpu.dot_dimension_numbers<[2], [2], [1], [1], [0, 0, 0, 1, 1, 1], [0], [0]>} : vector<2x8x8xbf16>, vector<2x8x8xbf16>, vector<2x8x8xf32> -> vector<2x8x8xf32>
    "tpu.trace_stop"() : () -> ()
    %cst_37 = arith.constant 0.353553385 : f32
    %139 = vector.broadcast %cst_37 : f32 to vector<2x8x8xf32>
    %140 = arith.mulf %138, %139 : vector<2x8x8xf32>
    %141 = vector.shape_cast %36 : vector<8x8xi1> to vector<1x8x8xi1>
    %cst_38 = arith.constant -1.000000e+30 : f32
    %142 = vector.shape_cast %141 : vector<1x8x8xi1> to vector<1x8x8xi1>
    %143 = vector.broadcast %142 : vector<1x8x8xi1> to vector<2x8x8xi1>
    %144 = vector.broadcast %cst_38 : f32 to vector<2x8x8xf32>
    %145 = arith.select %143, %144, %140 : vector<2x8x8xi1>, vector<2x8x8xf32>
    %cst_39 = arith.constant dense<0xFF800000> : vector<2x8xf32>
    %146 = vector.multi_reduction <maximumf>, %145, %cst_39 [2] : vector<2x8x8xf32> to vector<2x8xf32>
    %147 = vector.shape_cast %146 : vector<2x8xf32> to vector<2x8x1xf32>
    %148 = vector.broadcast %147 : vector<2x8x1xf32> to vector<2x8x8xf32>
    %149 = arith.subf %145, %148 : vector<2x8x8xf32>
    %150 = math.exp %149 : vector<2x8x8xf32>
    %cst_40 = arith.constant dense<0.000000e+00> : vector<2x8xf32>
    %151 = vector.multi_reduction <add>, %150, %cst_40 [2] : vector<2x8x8xf32> to vector<2x8xf32>
    %152 = vector.shape_cast %151 : vector<2x8xf32> to vector<2x8x1xf32>
    %153 = tpu.reciprocal %152 {approx = true} : vector<2x8x1xf32> -> vector<2x8x1xf32>
    %154 = vector.broadcast %153 : vector<2x8x1xf32> to vector<2x8x8xf32>
    %155 = arith.mulf %150, %154 : vector<2x8x8xf32>
    %156 = arith.truncf %155 : vector<2x8x8xf32> to vector<2x8x8xbf16>
    %157 = arith.truncf %135 : vector<2x8x8xf32> to vector<2x8x8xbf16>
    "tpu.trace_start"() <{level = 10 : i32, message = "bqk,bkd->bqd"}> : () -> ()
    %cst_41 = arith.constant dense<0.000000e+00> : vector<2x8x8xf32>
    %158 = tpu.matmul %156, %157, %cst_41 {dimension_numbers = #tpu.dot_dimension_numbers<[2], [1], [1], [2], [0, 0, 0, 1, 1, 2], [0], [0]>} : vector<2x8x8xbf16>, vector<2x8x8xbf16>, vector<2x8x8xf32> -> vector<2x8x8xf32>
    "tpu.trace_stop"() : () -> ()
    %159 = vector.shape_cast %158 : vector<2x8x8xf32> to vector<16x8xf32>
    %c0_42 = arith.constant 0 : index
    %c24 = arith.constant 24 : index
    %160 = vector.load %arg14[%c0_42, %c24] : memref<16x32xf32, #tpu.memory_space<vmem>>, vector<16x8xf32>
    tpu.vector_store %arg14[%c0_42, %c24], %159 {strides = array<i32>} : memref<16x32xf32, #tpu.memory_space<vmem>>, vector<16x8xf32>,
    %c0_43 = arith.constant 0 : index
    %c0_44 = arith.constant 0 : index
    %161 = vector.load %arg14[%c0_43, %c0_44] : memref<16x32xf32, #tpu.memory_space<vmem>>, vector<16x32xf32>
    %162 = arith.truncf %161 : vector<16x32xf32> to vector<16x32xbf16>
    %c0_45 = arith.constant 0 : index
    %c0_46 = arith.constant 0 : index
    %163 = vector.load %arg7[%c0_45, %c0_46] : memref<32x32xbf16, #tpu.memory_space<vmem>>, vector<32x32xbf16>
    %cst_47 = arith.constant dense<0.000000e+00> : vector<16x32xf32>
    %164 = tpu.matmul %162, %163, %cst_47 {dimension_numbers = #tpu.dot_dimension_numbers<[1], [0], [0], [1], [0, 0, 1, 1], [], []>} : vector<16x32xbf16>, vector<32x32xbf16>, vector<16x32xf32> -> vector<16x32xf32>
    %c0_48 = arith.constant 0 : index
    %c0_49 = arith.constant 0 : index
    %165 = vector.load %arg8[%c0_48, %c0_49] : memref<1x32xf32, #tpu.memory_space<vmem>>, vector<1x32xf32>
    %166 = vector.broadcast %165 : vector<1x32xf32> to vector<16x32xf32>
    %167 = arith.addf %164, %166 : vector<16x32xf32>
    %168 = arith.addf %0, %167 : vector<16x32xf32>
    %c0_50 = arith.constant 0 : index
    %c0_51 = arith.constant 0 : index
    %169 = vector.load %arg3[%c0_50, %c0_51] : memref<1x32xf32, #tpu.memory_space<vmem>>, vector<1x32xf32>
    %c0_52 = arith.constant 0 : index
    %c0_53 = arith.constant 0 : index
    %170 = vector.load %arg4[%c0_52, %c0_53] : memref<1x32xf32, #tpu.memory_space<vmem>>, vector<1x32xf32>
    %cst_54 = arith.constant dense<0.000000e+00> : vector<16xf32>
    %171 = vector.multi_reduction <add>, %168, %cst_54 [1] : vector<16x32xf32> to vector<16xf32>
    %172 = vector.shape_cast %171 : vector<16xf32> to vector<16x1xf32>
    %cst_55 = arith.constant 3.200000e+01 : f32
    %173 = vector.broadcast %cst_55 : f32 to vector<16x1xf32>
    %174 = arith.divf %172, %173 : vector<16x1xf32>
    %175 = vector.broadcast %174 : vector<16x1xf32> to vector<16x32xf32>
    %176 = arith.subf %168, %175 : vector<16x32xf32>
    %177 = arith.mulf %176, %176 : vector<16x32xf32>
    %cst_56 = arith.constant dense<0.000000e+00> : vector<16xf32>
    %178 = vector.multi_reduction <add>, %177, %cst_56 [1] : vector<16x32xf32> to vector<16xf32>
    %179 = vector.shape_cast %178 : vector<16xf32> to vector<16x1xf32>
    %cst_57 = arith.constant 3.200000e+01 : f32
    %180 = vector.broadcast %cst_57 : f32 to vector<16x1xf32>
    %181 = arith.divf %179, %180 : vector<16x1xf32>
    %182 = vector.broadcast %174 : vector<16x1xf32> to vector<16x32xf32>
    %183 = arith.subf %168, %182 : vector<16x32xf32>
    %cst_58 = arith.constant 9.99999974E-6 : f32
    %184 = vector.broadcast %cst_58 : f32 to vector<16x1xf32>
    %185 = arith.addf %181, %184 : vector<16x1xf32>
    %186 = math.rsqrt %185 : vector<16x1xf32>
    %187 = vector.broadcast %186 : vector<16x1xf32> to vector<16x32xf32>
    %188 = arith.mulf %183, %187 : vector<16x32xf32>
    %189 = vector.broadcast %169 : vector<1x32xf32> to vector<16x32xf32>
    %190 = arith.mulf %188, %189 : vector<16x32xf32>
    %191 = vector.broadcast %170 : vector<1x32xf32> to vector<16x32xf32>
    %192 = arith.addf %190, %191 : vector<16x32xf32>
    %193 = arith.truncf %192 : vector<16x32xf32> to vector<16x32xbf16>
    %c0_59 = arith.constant 0 : index
    %c0_60 = arith.constant 0 : index
    %194 = vector.load %arg9[%c0_59, %c0_60] : memref<32x128xbf16, #tpu.memory_space<vmem>>, vector<32x128xbf16>
    %cst_61 = arith.constant dense<0.000000e+00> : vector<16x128xf32>
    %195 = tpu.matmul %193, %194, %cst_61 {dimension_numbers = #tpu.dot_dimension_numbers<[1], [0], [0], [1], [0, 0, 1, 1], [], []>} : vector<16x32xbf16>, vector<32x128xbf16>, vector<16x128xf32> -> vector<16x128xf32>
    %c0_62 = arith.constant 0 : index
    %c0_63 = arith.constant 0 : index
    %196 = vector.load %arg10[%c0_62, %c0_63] : memref<1x128xf32, #tpu.memory_space<vmem>>, vector<1x128xf32>
    %197 = vector.broadcast %196 : vector<1x128xf32> to vector<16x128xf32>
    %198 = arith.addf %195, %197 : vector<16x128xf32>
    %cst_64 = arith.constant 5.000000e-01 : f32
    %199 = vector.broadcast %cst_64 : f32 to vector<16x128xf32>
    %200 = arith.mulf %199, %198 : vector<16x128xf32>
    %cst_65 = arith.constant 0.707106769 : f32
    %201 = vector.broadcast %cst_65 : f32 to vector<16x128xf32>
    %202 = arith.mulf %198, %201 : vector<16x128xf32>
    %203 = math.erf %202 : vector<16x128xf32>
    %cst_66 = arith.constant 1.000000e+00 : f32
    %204 = vector.broadcast %cst_66 : f32 to vector<16x128xf32>
    %205 = arith.addf %204, %203 : vector<16x128xf32>
    %206 = arith.mulf %200, %205 : vector<16x128xf32>
    %207 = arith.truncf %206 : vector<16x128xf32> to vector<16x128xbf16>
    %c0_67 = arith.constant 0 : index
    %c0_68 = arith.constant 0 : index
    %208 = vector.load %arg11[%c0_67, %c0_68] : memref<128x32xbf16, #tpu.memory_space<vmem>>, vector<128x32xbf16>
    %cst_69 = arith.constant dense<0.000000e+00> : vector<16x32xf32>
    %209 = tpu.matmul %207, %208, %cst_69 {dimension_numbers = #tpu.dot_dimension_numbers<[1], [0], [0], [1], [0, 0, 1, 1], [], []>} : vector<16x128xbf16>, vector<128x32xbf16>, vector<16x32xf32> -> vector<16x32xf32>
    %c0_70 = arith.constant 0 : index
    %c0_71 = arith.constant 0 : index
    %210 = vector.load %arg12[%c0_70, %c0_71] : memref<1x32xf32, #tpu.memory_space<vmem>>, vector<1x32xf32>
    %211 = vector.broadcast %210 : vector<1x32xf32> to vector<16x32xf32>
    %212 = arith.addf %209, %211 : vector<16x32xf32>
    %213 = arith.addf %168, %212 : vector<16x32xf32>
    %c0_72 = arith.constant 0 : index
    %c0_73 = arith.constant 0 : index
    %214 = vector.load %arg13[%c0_72, %c0_73] : memref<16x32xf32, #tpu.memory_space<vmem>>, vector<16x32xf32>
    tpu.vector_store %arg13[%c0_72, %c0_73], %213 {strides = array<i32>} : memref<16x32xf32, #tpu.memory_space<vmem>>, vector<16x32xf32>,
    return
  }
}

</mosaic_0001>

<llo_original>
// kernel: tpu_custom_call.1
$region0: #{tpu_custom_call.1}
  #allocation0 [shape = 'u32[]', space=smem, size = 0x4, offset = 0x4, fixed_abs, tag = 'smem constant byte address 0x4 - core index']
  #allocation1 [shape = 'u32[144,128]{1,0:T(1,128)}', space=vmem, size = 0x12000, scoped, tag = 'internal scratch']
  #allocation2 [shape = 'f32[16,32]{1,0:T(8,128)}', space=vmem, size = 0x2000, scoped, tag = 'scratch operand']
  %s0 = inlined_call_operand.vmem [shape: f32[16,32], index: 0, kind: input, shape index: {}]
  %s1 = inlined_call_operand.vmem [shape: f32[1,32], index: 1, kind: input, shape index: {}]
  %s2 = inlined_call_operand.vmem [shape: f32[1,32], index: 2, kind: input, shape index: {}]
  %s3 = inlined_call_operand.vmem [shape: f32[1,32], index: 3, kind: input, shape index: {}]
  %s4 = inlined_call_operand.vmem [shape: f32[1,32], index: 4, kind: input, shape index: {}]
  %s5 = inlined_call_operand.vmem [shape: bf16[32,96], index: 5, kind: input, shape index: {}]
  %s6 = inlined_call_operand.vmem [shape: f32[1,96], index: 6, kind: input, shape index: {}]
  %s7 = inlined_call_operand.vmem [shape: bf16[32,32], index: 7, kind: input, shape index: {}]
  %s8 = inlined_call_operand.vmem [shape: f32[1,32], index: 8, kind: input, shape index: {}]
  %s9 = inlined_call_operand.vmem [shape: bf16[32,128], index: 9, kind: input, shape index: {}]
  %s10 = inlined_call_operand.vmem [shape: f32[1,128], index: 10, kind: input, shape index: {}]
  %s11 = inlined_call_operand.vmem [shape: bf16[128,32], index: 11, kind: input, shape index: {}]
  %s12 = inlined_call_operand.vmem [shape: f32[1,32], index: 12, kind: input, shape index: {}]
  %s13 = inlined_call_operand.hbm [shape: f32[16,32], index: 13, kind: output, shape index: {}]
  %s14 = sld [smem:[#allocation0]]
  $region62: #{tpu_custom_call.1} parent=0
    _
  %s16 = ssub.s32 1, %s14
  %s17 = scalar_select 0, %s16, %s14
  $region1: #{tpu_custom_call.1} parent=0
    #allocation3 [shape = 'u8[8192]{0}', space=vmem, size = 0x2000, scoped, tag = 'output window, operand 0, single buffered']
    #allocation4 [shape = 's32[1]{0}', space=sflag, size = 0x4, scoped, tag = 'scoped memory for tpu_custom_call.1']
    %18 = vsyncpa [#allocation4], 0
    // Predicated region
    $region2: #{tpu_custom_call.1} parent=1 // pred_check
      _
    $region3: #{tpu_custom_call.1} parent=1 // pred_check_branch
      %20 = sbr.rel (0) target = $region5
    $region4: #{tpu_custom_call.1} parent=1 // pred_region
      _
    $region5: #{tpu_custom_call.1} parent=1 // pred_fallthru
      _
    // Predicated region
    $region6: #{tpu_custom_call.1} parent=1 // pred_check
      _
    $region7: #{tpu_custom_call.1} parent=1 // pred_check_branch
      %22 = sbr.rel (0) target = $region9
    $region8: #{tpu_custom_call.1} parent=1 // pred_region
      _
    $region9: #{tpu_custom_call.1} parent=1 // pred_fallthru
      _
    // Predicated region
    $region10: #{tpu_custom_call.1} parent=1 // pred_check
      _
    $region11: #{tpu_custom_call.1} parent=1 // pred_check_branch
      %24 = sbr.rel (0) target = $region13
    $region12: #{tpu_custom_call.1} parent=1 // pred_region
      _
    $region13: #{tpu_custom_call.1} parent=1 // pred_fallthru
      _
    // Predicated region
    $region14: #{tpu_custom_call.1} parent=1 // pred_check
      _
    $region15: #{tpu_custom_call.1} parent=1 // pred_check_branch
      %26 = sbr.rel (0) target = $region17
    $region16: #{tpu_custom_call.1} parent=1 // pred_region
      _
    $region17: #{tpu_custom_call.1} parent=1 // pred_fallthru
      _
    // Predicated region
    $region18: #{tpu_custom_call.1} parent=1 // pred_check
      _
    $region19: #{tpu_custom_call.1} parent=1 // pred_check_branch
      %28 = sbr.rel (0) target = $region21
    $region20: #{tpu_custom_call.1} parent=1 // pred_region
      _
    $region21: #{tpu_custom_call.1} parent=1 // pred_fallthru
      _
    // Predicated region
    $region22: #{tpu_custom_call.1} parent=1 // pred_check
      _
    $region23: #{tpu_custom_call.1} parent=1 // pred_check_branch
      %30 = sbr.rel (0) target = $region25
    $region24: #{tpu_custom_call.1} parent=1 // pred_region
      _
    $region25: #{tpu_custom_call.1} parent=1 // pred_fallthru
      _
    // Predicated region
    $region26: #{tpu_custom_call.1} parent=1 // pred_check
      _
    $region27: #{tpu_custom_call.1} parent=1 // pred_check_branch
      %32 = sbr.rel (0) target = $region29
    $region28: #{tpu_custom_call.1} parent=1 // pred_region
      _
    $region29: #{tpu_custom_call.1} parent=1 // pred_fallthru
      _
    // Predicated region
    $region30: #{tpu_custom_call.1} parent=1 // pred_check
      _
    $region31: #{tpu_custom_call.1} parent=1 // pred_check_branch
      %34 = sbr.rel (0) target = $region33
    $region32: #{tpu_custom_call.1} parent=1 // pred_region
      _
    $region33: #{tpu_custom_call.1} parent=1 // pred_fallthru
      _
    // Predicated region
    $region34: #{tpu_custom_call.1} parent=1 // pred_check
      _
    $region35: #{tpu_custom_call.1} parent=1 // pred_check_branch
      %36 = sbr.rel (0) target = $region37
    $region36: #{tpu_custom_call.1} parent=1 // pred_region
      _
    $region37: #{tpu_custom_call.1} parent=1 // pred_fallthru
      _
    // Predicated region
    $region38: #{tpu_custom_call.1} parent=1 // pred_check
      _
    $region39: #{tpu_custom_call.1} parent=1 // pred_check_branch
      %38 = sbr.rel (0) target = $region41
    $region40: #{tpu_custom_call.1} parent=1 // pred_region
      _
    $region41: #{tpu_custom_call.1} parent=1 // pred_fallthru
      _
    // Predicated region
    $region42: #{tpu_custom_call.1} parent=1 // pred_check
      _
    $region43: #{tpu_custom_call.1} parent=1 // pred_check_branch
      %40 = sbr.rel (0) target = $region45
    $region44: #{tpu_custom_call.1} parent=1 // pred_region
      _
    $region45: #{tpu_custom_call.1} parent=1 // pred_fallthru
      _
    // Predicated region
    $region46: #{tpu_custom_call.1} parent=1 // pred_check
      _
    $region47: #{tpu_custom_call.1} parent=1 // pred_check_branch
      %42 = sbr.rel (0) target = $region49
    $region48: #{tpu_custom_call.1} parent=1 // pred_region
      _
    $region49: #{tpu_custom_call.1} parent=1 // pred_fallthru
      _
    // Predicated region
    $region50: #{tpu_custom_call.1} parent=1 // pred_check
      _
    $region51: #{tpu_custom_call.1} parent=1 // pred_check_branch
      %44 = sbr.rel (0) target = $region53
    $region52: #{tpu_custom_call.1} parent=1 // pred_region
      _
    $region53: #{tpu_custom_call.1} parent=1 // pred_fallthru
      _
    %v46 = vld [vmem:[%s0] sm:$0xff]
    %v47 = vld [vmem:[%s0 + $0x8] sm:$0xff]
    %v48 = vld [vmem:[%s1] sm:$0x1]
    %v49 = vld [vmem:[%s2] sm:$0x1]
    %vm50 = vcmask 261120
    %v51 = vsel %vm50, %v46, 0.0
    %52 = vadd.xlane.f32.xlu0 %v51
    %v53 = vpop.xlane.xlu0 %52
    %v54 = vsel %vm50, %v47, 0.0
    %55 = vadd.xlane.f32.xlu0 %v54
    %v56 = vpop.xlane.xlu0 %55
    %v57 = vrcp.pop 32.0
    %v58 = vmul.f32 %v53, %v57
    %v59 = vmul.f32 %v56, %v57
    %v60 = vsub.f32 %v46, %v58
    %v61 = vsub.f32 %v47, %v59
    %v62 = vmul.f32 %v60, %v60
    %v63 = vmul.f32 %v61, %v61
    %v64 = vsel %vm50, %v62, 0.0
    %65 = vadd.xlane.f32.xlu0 %v64
    %v66 = vpop.xlane.xlu0 %65
    %v67 = vsel %vm50, %v63, 0.0
    %68 = vadd.xlane.f32.xlu0 %v67
    %v69 = vpop.xlane.xlu0 %68
    %v70 = vmul.f32 %v66, %v57
    %v71 = vmul.f32 %v69, %v57
    %v72 = vadd.f32 %v70, 1e-05
    %v73 = vadd.f32 %v71, 1e-05
    %v74 = vrsqrt.pop %v72
    %v75 = vrsqrt.pop %v73
    %v76 = vmul.f32 %v60, %v74
    %v77 = vmul.f32 %v61, %v75
    %v79 = vlaneseq
    %v80 = vshrl.u32 %v79, 7
    %v81 = vsub.s32 0, %v80
    %v82 = vrot.slane %v48, %v81
    %v84 = vmul.f32 %v76, %v82
    %v85 = vmul.f32 %v77, %v82
    %v87 = vlaneseq
    %v88 = vshrl.u32 %v87, 7
    %v89 = vsub.s32 0, %v88
    %v90 = vrot.slane %v49, %v89
    %v92 = vadd.f32 %v84, %v90
    %v93 = vadd.f32 %v85, %v90
    %v94 = vpack.c.bf16 %v93, %v92
    %v95 = vld [vmem:[%s5] sm:$0xf]
    %v96 = vld [vmem:[%s5 + $0x4] sm:$0xf]
    %v97 = vld [vmem:[%s5 + $0x8] sm:$0xf]
    %v98 = vld [vmem:[%s5 + $0xc] sm:$0xf]
    %v99 = vld [vmem:[%s6] sm:$0x1]
    %v101 = vlaneseq
    %v102 = vshrl.u32 %v101, 7
    %v103 = vsub.s32 0, %v102
    %v104 = vrot.slane %v99, %v103
    %v110 = vunpack.c.l.b16 %v95
    %v111 = vunpack.c.l.b16 %v96
    %v112 = vunpack.c.l.b16 %v97
    %v113 = vunpack.c.l.b16 %v98
    %v114 = vpack.c.b16 %v111, %v110
    %v115 = vpack.c.b16 %v113, %v112
    %v119 = vsel %vm50, %v94, 0
    %121 = vmatprep.subr.bf16.mxu0 0
    %122 = vmatpush1.bf16.msra.mxu0 0
    %123 = vmatprep.subr.bf16.mxu0 0
    %124 = vmatpush1.bf16.msra.mxu0 0
    %125 = vmatprep.subr.bf16.mxu0 0
    %126 = vmatpush1.bf16.msra.mxu0 0
    %127 = vmatprep.subr.bf16.mxu0 0
    %128 = vmatpush1.bf16.msra.mxu0 0
    %129 = vmatprep.subr.bf16.mxu0 0
    %130 = vmatpush1.bf16.msra.mxu0 0
    %131 = vmatprep.subr.bf16.mxu0 0
    %132 = vmatpush1.bf16.msra.mxu0 0
    %133 = vmatprep.subr.bf16.mxu0 0
    %134 = vmatpush1.bf16.msra.mxu0 %v115
    %135 = vmatprep.subr.bf16.mxu0 0
    %136 = vmatpush1.bf16.msra.mxu0 %v114
    %137 = vmatprep.subr.bf16.mxu0 0
    %138 = vmatpush2.bf16.msra.mxu0 0
    %139 = vmatprep.subr.bf16.mxu0 0
    %140 = vmatpush2.bf16.msra.mxu0 0
    %141 = vmatprep.subr.bf16.mxu0 0
    %142 = vmatpush2.bf16.msra.mxu0 0
    %143 = vmatprep.subr.bf16.mxu0 0
    %144 = vmatpush2.bf16.msra.mxu0 0
    %145 = vmatprep.subr.bf16.mxu0 0
    %146 = vmatpush2.bf16.msra.mxu0 0
    %147 = vmatprep.subr.bf16.mxu0 0
    %148 = vmatpush2.bf16.msra.mxu0 0
    %149 = vmatprep.subr.bf16.mxu0 0
    %150 = vmatpush2.bf16.msra.mxu0 0
    %151 = vmatprep.subr.bf16.mxu0 0
    %152 = vmatpush2.bf16.msra.mxu0 0
    %153 = vmatprep.mubr.bf16.mxu0 0
    %154 = vmatmul.mubr.bf16.gmra.mxu0 %v119
    %v155 = vpop.f32.mrf.mxu0
    %v156 = vadd.f32 %v104, %v155
    %v157 = vpop.f32.mrf.mxu0
    %v158 = vpop.f32.mrf.mxu0
    %v159 = vadd.f32 %v104, %v158
    %v160 = vpop.f32.mrf.mxu0
    %161 = vdwg.mxu0
    %v162 = vlaneseq
    %v163 = vshrl.u32 %v162, 7
    %v164 = vlaneseq
    %v165 = vand.u32 %v164, 127
    %vm166 = vcmp.gt.s32.totalorder %v165, %v163
    %v167 = vpack.c.bf16 %v156, %v156
    %v168 = vpack.c.bf16 %v159, %v159
    %170 = vrot.lane.b32.xlu0 %v167, 96
    %v171 = vpop.permute.xlu0 %170
    %vm172 = vcmask 64512
    %v174 = vsel %vm172, %v167, 0
    %v177 = vsel %vm172, %v171, 0
    %179 = vmatprep.subr.bf16.mxu0 0
    %180 = vmatpush1.bf16.xpose.msra.mxu0 0
    %181 = vmatprep.subr.bf16.mxu0 0
    %182 = vmatpush1.bf16.xpose.msra.mxu0 0
    %183 = vmatprep.subr.bf16.mxu0 0
    %184 = vmatpush1.bf16.xpose.msra.mxu0 0
    %185 = vmatprep.subr.bf16.mxu0 0
    %186 = vmatpush1.bf16.xpose.msra.mxu0 0
    %187 = vmatprep.subr.bf16.mxu0 0
    %188 = vmatpush1.bf16.xpose.msra.mxu0 0
    %189 = vmatprep.subr.bf16.mxu0 0
    %190 = vmatpush1.bf16.xpose.msra.mxu0 0
    %191 = vmatprep.subr.bf16.mxu0 0
    %192 = vmatpush1.bf16.xpose.msra.mxu0 0
    %193 = vmatprep.subr.bf16.mxu0 0
    %194 = vmatpush1.bf16.xpose.msra.mxu0 %v177
    %195 = vmatprep.subr.bf16.mxu0 0
    %196 = vmatpush2.bf16.xpose.msra.mxu0 0
    %197 = vmatprep.subr.bf16.mxu0 0
    %198 = vmatpush2.bf16.xpose.msra.mxu0 0
    %199 = vmatprep.subr.bf16.mxu0 0
    %200 = vmatpush2.bf16.xpose.msra.mxu0 0
    %201 = vmatprep.subr.bf16.mxu0 0
    %202 = vmatpush2.bf16.xpose.msra.mxu0 0
    %203 = vmatprep.subr.bf16.mxu0 0
    %204 = vmatpush2.bf16.xpose.msra.mxu0 0
    %205 = vmatprep.subr.bf16.mxu0 0
    %206 = vmatpush2.bf16.xpose.msra.mxu0 0
    %207 = vmatprep.subr.bf16.mxu0 0
    %208 = vmatpush2.bf16.xpose.msra.mxu0 0
    %209 = vmatprep.subr.bf16.mxu0 0
    %210 = vmatpush2.bf16.xpose.msra.mxu0 0
    %211 = vmatprep.mubr.bf16.mxu0 0
    %212 = vmatmul.mubr.bf16.gmra.mxu0 %v174
    %v213 = vpop.f32.mrf.mxu0
    %v214 = vadd.f32 0.0, %v213
    %v215 = vpop.f32.mrf.mxu0
    %v216 = vpop.f32.mrf.mxu0
    %v217 = vpop.f32.mrf.mxu0
    %218 = vdwg.mxu0
    %220 = vrot.lane.b32.xlu0 %v168, 96
    %v221 = vpop.permute.xlu0 %220
    %v223 = vsel %vm172, %v168, 0
    %v226 = vsel %vm172, %v221, 0
    %228 = vmatprep.subr.bf16.mxu0 0
    %229 = vmatpush1.bf16.xpose.msra.mxu0 0
    %230 = vmatprep.subr.bf16.mxu0 0
    %231 = vmatpush1.bf16.xpose.msra.mxu0 0
    %232 = vmatprep.subr.bf16.mxu0 0
    %233 = vmatpush1.bf16.xpose.msra.mxu0 0
    %234 = vmatprep.subr.bf16.mxu0 0
    %235 = vmatpush1.bf16.xpose.msra.mxu0 0
    %236 = vmatprep.subr.bf16.mxu0 0
    %237 = vmatpush1.bf16.xpose.msra.mxu0 0
    %238 = vmatprep.subr.bf16.mxu0 0
    %239 = vmatpush1.bf16.xpose.msra.mxu0 0
    %240 = vmatprep.subr.bf16.mxu0 0
    %241 = vmatpush1.bf16.xpose.msra.mxu0 0
    %242 = vmatprep.subr.bf16.mxu0 0
    %243 = vmatpush1.bf16.xpose.msra.mxu0 %v226
    %244 = vmatprep.subr.bf16.mxu0 0
    %245 = vmatpush2.bf16.xpose.msra.mxu0 0
    %246 = vmatprep.subr.bf16.mxu0 0
    %247 = vmatpush2.bf16.xpose.msra.mxu0 0
    %248 = vmatprep.subr.bf16.mxu0 0
    %249 = vmatpush2.bf16.xpose.msra.mxu0 0
    %250 = vmatprep.subr.bf16.mxu0 0
    %251 = vmatpush2.bf16.xpose.msra.mxu0 0
    %252 = vmatprep.subr.bf16.mxu0 0
    %253 = vmatpush2.bf16.xpose.msra.mxu0 0
    %254 = vmatprep.subr.bf16.mxu0 0
    %255 = vmatpush2.bf16.xpose.msra.mxu0 0
    %256 = vmatprep.subr.bf16.mxu0 0
    %257 = vmatpush2.bf16.xpose.msra.mxu0 0
    %258 = vmatprep.subr.bf16.mxu0 0
    %259 = vmatpush2.bf16.xpose.msra.mxu0 0
    %260 = vmatprep.mubr.bf16.mxu0 0
    %261 = vmatmul.mubr.bf16.gmra.mxu0 %v223
    %v262 = vpop.f32.mrf.mxu0
    %v263 = vadd.f32 0.0, %v262
    %v264 = vpop.f32.mrf.mxu0
    %v265 = vpop.f32.mrf.mxu0
    %v266 = vpop.f32.mrf.mxu0
    %267 = vdwg.mxu0
    %v268 = vmul.f32 %v214, 0.35355338
    %v269 = vmul.f32 %v263, 0.35355338
    %v270 = vsel %vm166, 1, 0
    %vm271 = vcmp.eq.s32.totalorder %v270, 1
    %v272 = vsel %vm271, -1e+30, %v268
    %v273 = vsel %vm271, -1e+30, %v269
    %v274 = vsel %vm172, %v272, -inf
    %275 = vmax.xlane.f32.xlu0 %v274
    %v276 = vpop.xlane.xlu0 %275
    %v277 = vsel %vm172, %v273, -inf
    %278 = vmax.xlane.f32.xlu0 %v277
    %v279 = vpop.xlane.xlu0 %278
    %v280 = vsub.f32 %v272, %v276
    %v281 = vsub.f32 %v273, %v279
    %v282 = vmul.f32 %v280, 1.442695
    %v283 = vpow.pop %v282
    %v284 = vmul.f32 %v281, 1.442695
    %v285 = vpow.pop %v284
    %v286 = vsel %vm172, %v283, 0.0
    %287 = vadd.xlane.f32.xlu0 %v286
    %v288 = vpop.xlane.xlu0 %287
    %v289 = vsel %vm172, %v285, 0.0
    %290 = vadd.xlane.f32.xlu0 %v289
    %v291 = vpop.xlane.xlu0 %290
    %v292 = vrcp.pop %v288
    %v293 = vrcp.pop %v291
    %v294 = vmul.f32 %v283, %v292
    %v295 = vmul.f32 %v285, %v293
    %v296 = vpack.c.bf16 %v294, %v294
    %v297 = vpack.c.bf16 %v295, %v295
    %298 = vrot.lane.b32.xlu0 %v167, 64
    %v299 = vpop.permute.xlu0 %298
    %v301 = vsel %vm172, %v296, 0
    %vm303 = vcmask 1043456
    %v305 = vsel %vm303, %v299, 0
    %307 = vmatprep.subr.bf16.mxu0 0
    %308 = vmatpush1.bf16.msra.mxu0 0
    %309 = vmatprep.subr.bf16.mxu0 0
    %310 = vmatpush1.bf16.msra.mxu0 0
    %311 = vmatprep.subr.bf16.mxu0 0
    %312 = vmatpush1.bf16.msra.mxu0 0
    %313 = vmatprep.subr.bf16.mxu0 0
    %314 = vmatpush1.bf16.msra.mxu0 0
    %315 = vmatprep.subr.bf16.mxu0 0
    %316 = vmatpush1.bf16.msra.mxu0 0
    %317 = vmatprep.subr.bf16.mxu0 0
    %318 = vmatpush1.bf16.msra.mxu0 0
    %319 = vmatprep.subr.bf16.mxu0 0
    %320 = vmatpush1.bf16.msra.mxu0 0
    %321 = vmatprep.subr.bf16.mxu0 0
    %322 = vmatpush1.bf16.msra.mxu0 %v305
    %323 = vmatprep.subr.bf16.mxu0 0
    %324 = vmatpush2.bf16.msra.mxu0 0
    %325 = vmatprep.subr.bf16.mxu0 0
    %326 = vmatpush2.bf16.msra.mxu0 0
    %327 = vmatprep.subr.bf16.mxu0 0
    %328 = vmatpush2.bf16.msra.mxu0 0
    %329 = vmatprep.subr.bf16.mxu0 0
    %330 = vmatpush2.bf16.msra.mxu0 0
    %331 = vmatprep.subr.bf16.mxu0 0
    %332 = vmatpush2.bf16.msra.mxu0 0
    %333 = vmatprep.subr.bf16.mxu0 0
    %334 = vmatpush2.bf16.msra.mxu0 0
    %335 = vmatprep.subr.bf16.mxu0 0
    %336 = vmatpush2.bf16.msra.mxu0 0
    %337 = vmatprep.subr.bf16.mxu0 0
    %338 = vmatpush2.bf16.msra.mxu0 0
    %339 = vmatprep.mubr.bf16.mxu0 0
    %340 = vmatmul.mubr.bf16.gmra.mxu0 %v301
    %v341 = vpop.f32.mrf.mxu0
    %v342 = vadd.f32 0.0, %v341
    %v343 = vpop.f32.mrf.mxu0
    %v344 = vpop.f32.mrf.mxu0
    %v345 = vpop.f32.mrf.mxu0
    %346 = vdwg.mxu0
    %347 = vrot.lane.b32.xlu0 %v168, 64
    %v348 = vpop.permute.xlu0 %347
    %v350 = vsel %vm172, %v297, 0
    %v353 = vsel %vm303, %v348, 0
    %355 = vmatprep.subr.bf16.mxu0 0
    %356 = vmatpush1.bf16.msra.mxu0 0
    %357 = vmatprep.subr.bf16.mxu0 0
    %358 = vmatpush1.bf16.msra.mxu0 0
    %359 = vmatprep.subr.bf16.mxu0 0
    %360 = vmatpush1.bf16.msra.mxu0 0
    %361 = vmatprep.subr.bf16.mxu0 0
    %362 = vmatpush1.bf16.msra.mxu0 0
    %363 = vmatprep.subr.bf16.mxu0 0
    %364 = vmatpush1.bf16.msra.mxu0 0
    %365 = vmatprep.subr.bf16.mxu0 0
    %366 = vmatpush1.bf16.msra.mxu0 0
    %367 = vmatprep.subr.bf16.mxu0 0
    %368 = vmatpush1.bf16.msra.mxu0 0
    %369 = vmatprep.subr.bf16.mxu0 0
    %370 = vmatpush1.bf16.msra.mxu0 %v353
    %371 = vmatprep.subr.bf16.mxu0 0
    %372 = vmatpush2.bf16.msra.mxu0 0
    %373 = vmatprep.subr.bf16.mxu0 0
    %374 = vmatpush2.bf16.msra.mxu0 0
    %375 = vmatprep.subr.bf16.mxu0 0
    %376 = vmatpush2.bf16.msra.mxu0 0
    %377 = vmatprep.subr.bf16.mxu0 0
    %378 = vmatpush2.bf16.msra.mxu0 0
    %379 = vmatprep.subr.bf16.mxu0 0
    %380 = vmatpush2.bf16.msra.mxu0 0
    %381 = vmatprep.subr.bf16.mxu0 0
    %382 = vmatpush2.bf16.msra.mxu0 0
    %383 = vmatprep.subr.bf16.mxu0 0
    %384 = vmatpush2.bf16.msra.mxu0 0
    %385 = vmatprep.subr.bf16.mxu0 0
    %386 = vmatpush2.bf16.msra.mxu0 0
    %387 = vmatprep.mubr.bf16.mxu0 0
    %388 = vmatmul.mubr.bf16.gmra.mxu0 %v350
    %v389 = vpop.f32.mrf.mxu0
    %v390 = vadd.f32 0.0, %v389
    %v391 = vpop.f32.mrf.mxu0
    %v392 = vpop.f32.mrf.mxu0
    %v393 = vpop.f32.mrf.mxu0
    %394 = vdwg.mxu0
    %395 = vst.msk [vmem:[#allocation2] sm:$0xff] %vm172, %v342
    %396 = vst.msk [vmem:[#allocation2 + $0x8] sm:$0xff] %vm172, %v390
    %397 = vrot.lane.b32.xlu0 %v167, 120
    %v398 = vpop.permute.xlu0 %397
    %399 = vrot.lane.b32.xlu0 %v167, 88
    %v400 = vpop.permute.xlu0 %399
    %v402 = vsel %vm172, %v398, 0
    %v405 = vsel %vm172, %v400, 0
    %407 = vmatprep.subr.bf16.mxu0 0
    %408 = vmatpush1.bf16.xpose.msra.mxu0 0
    %409 = vmatprep.subr.bf16.mxu0 0
    %410 = vmatpush1.bf16.xpose.msra.mxu0 0
    %411 = vmatprep.subr.bf16.mxu0 0
    %412 = vmatpush1.bf16.xpose.msra.mxu0 0
    %413 = vmatprep.subr.bf16.mxu0 0
    %414 = vmatpush1.bf16.xpose.msra.mxu0 0
    %415 = vmatprep.subr.bf16.mxu0 0
    %416 = vmatpush1.bf16.xpose.msra.mxu0 0
    %417 = vmatprep.subr.bf16.mxu0 0
    %418 = vmatpush1.bf16.xpose.msra.mxu0 0
    %419 = vmatprep.subr.bf16.mxu0 0
    %420 = vmatpush1.bf16.xpose.msra.mxu0 0
    %421 = vmatprep.subr.bf16.mxu0 0
    %422 = vmatpush1.bf16.xpose.msra.mxu0 %v405
    %423 = vmatprep.subr.bf16.mxu0 0
    %424 = vmatpush2.bf16.xpose.msra.mxu0 0
    %425 = vmatprep.subr.bf16.mxu0 0
    %426 = vmatpush2.bf16.xpose.msra.mxu0 0
    %427 = vmatprep.subr.bf16.mxu0 0
    %428 = vmatpush2.bf16.xpose.msra.mxu0 0
    %429 = vmatprep.subr.bf16.mxu0 0
    %430 = vmatpush2.bf16.xpose.msra.mxu0 0
    %431 = vmatprep.subr.bf16.mxu0 0
    %432 = vmatpush2.bf16.xpose.msra.mxu0 0
    %433 = vmatprep.subr.bf16.mxu0 0
    %434 = vmatpush2.bf16.xpose.msra.mxu0 0
    %435 = vmatprep.subr.bf16.mxu0 0
    %436 = vmatpush2.bf16.xpose.msra.mxu0 0
    %437 = vmatprep.subr.bf16.mxu0 0
    %438 = vmatpush2.bf16.xpose.msra.mxu0 0
    %439 = vmatprep.mubr.bf16.mxu0 0
    %440 = vmatmul.mubr.bf16.gmra.mxu0 %v402
    %v441 = vpop.f32.mrf.mxu0
    %v442 = vadd.f32 0.0, %v441
    %v443 = vpop.f32.mrf.mxu0
    %v444 = vpop.f32.mrf.mxu0
    %v445 = vpop.f32.mrf.mxu0
    %446 = vdwg.mxu0
    %447 = vrot.lane.b32.xlu0 %v168, 120
    %v448 = vpop.permute.xlu0 %447
    %449 = vrot.lane.b32.xlu0 %v168, 88
    %v450 = vpop.permute.xlu0 %449
    %v452 = vsel %vm172, %v448, 0
    %v455 = vsel %vm172, %v450, 0
    %457 = vmatprep.subr.bf16.mxu0 0
    %458 = vmatpush1.bf16.xpose.msra.mxu0 0
    %459 = vmatprep.subr.bf16.mxu0 0
    %460 = vmatpush1.bf16.xpose.msra.mxu0 0
    %461 = vmatprep.subr.bf16.mxu0 0
    %462 = vmatpush1.bf16.xpose.msra.mxu0 0
    %463 = vmatprep.subr.bf16.mxu0 0
    %464 = vmatpush1.bf16.xpose.msra.mxu0 0
    %465 = vmatprep.subr.bf16.mxu0 0
    %466 = vmatpush1.bf16.xpose.msra.mxu0 0
    %467 = vmatprep.subr.bf16.mxu0 0
    %468 = vmatpush1.bf16.xpose.msra.mxu0 0
    %469 = vmatprep.subr.bf16.mxu0 0
    %470 = vmatpush1.bf16.xpose.msra.mxu0 0
    %471 = vmatprep.subr.bf16.mxu0 0
    %472 = vmatpush1.bf16.xpose.msra.mxu0 %v455
    %473 = vmatprep.subr.bf16.mxu0 0
    %474 = vmatpush2.bf16.xpose.msra.mxu0 0
    %475 = vmatprep.subr.bf16.mxu0 0
    %476 = vmatpush2.bf16.xpose.msra.mxu0 0
    %477 = vmatprep.subr.bf16.mxu0 0
    %478 = vmatpush2.bf16.xpose.msra.mxu0 0
    %479 = vmatprep.subr.bf16.mxu0 0
    %480 = vmatpush2.bf16.xpose.msra.mxu0 0
    %481 = vmatprep.subr.bf16.mxu0 0
    %482 = vmatpush2.bf16.xpose.msra.mxu0 0
    %483 = vmatprep.subr.bf16.mxu0 0
    %484 = vmatpush2.bf16.xpose.msra.mxu0 0
    %485 = vmatprep.subr.bf16.mxu0 0
    %486 = vmatpush2.bf16.xpose.msra.mxu0 0
    %487 = vmatprep.subr.bf16.mxu0 0
    %488 = vmatpush2.bf16.xpose.msra.mxu0 0
    %489 = vmatprep.mubr.bf16.mxu0 0
    %490 = vmatmul.mubr.bf16.gmra.mxu0 %v452
    %v491 = vpop.f32.mrf.mxu0
    %v492 = vadd.f32 0.0, %v491
    %v493 = vpop.f32.mrf.mxu0
    %v494 = vpop.f32.mrf.mxu0
    %v495 = vpop.f32.mrf.mxu0
    %496 = vdwg.mxu0
    %v497 = vmul.f32 %v442, 0.35355338
    %v498 = vmul.f32 %v492, 0.35355338
    %v499 = vsel %vm271, -1e+30, %v497
    %v500 = vsel %vm271, -1e+30, %v498
    %v501 = vsel %vm172, %v499, -inf
    %502 = vmax.xlane.f32.xlu0 %v501
    %v503 = vpop.xlane.xlu0 %502
    %v504 = vsel %vm172, %v500, -inf
    %505 = vmax.xlane.f32.xlu0 %v504
    %v506 = vpop.xlane.xlu0 %505
    %v507 = vsub.f32 %v499, %v503
    %v508 = vsub.f32 %v500, %v506
    %v509 = vmul.f32 %v507, 1.442695
    %v510 = vpow.pop %v509
    %v511 = vmul.f32 %v508, 1.442695
    %v512 = vpow.pop %v511
    %v513 = vsel %vm172, %v510, 0.0
    %514 = vadd.xlane.f32.xlu0 %v513
    %v515 = vpop.xlane.xlu0 %514
    %v516 = vsel %vm172, %v512, 0.0
    %517 = vadd.xlane.f32.xlu0 %v516
    %v518 = vpop.xlane.xlu0 %517
    %v519 = vrcp.pop %v515
    %v520 = vrcp.pop %v518
    %v521 = vmul.f32 %v510, %v519
    %v522 = vmul.f32 %v512, %v520
    %v523 = vpack.c.bf16 %v521, %v521
    %v524 = vpack.c.bf16 %v522, %v522
    %525 = vrot.lane.b32.xlu0 %v167, 56
    %v526 = vpop.permute.xlu0 %525
    %v528 = vsel %vm172, %v523, 0
    %v531 = vsel %vm303, %v526, 0
    %533 = vmatprep.subr.bf16.mxu0 0
    %534 = vmatpush1.bf16.msra.mxu0 0
    %535 = vmatprep.subr.bf16.mxu0 0
    %536 = vmatpush1.bf16.msra.mxu0 0
    %537 = vmatprep.subr.bf16.mxu0 0
    %538 = vmatpush1.bf16.msra.mxu0 0
    %539 = vmatprep.subr.bf16.mxu0 0
    %540 = vmatpush1.bf16.msra.mxu0 0
    %541 = vmatprep.subr.bf16.mxu0 0
    %542 = vmatpush1.bf16.msra.mxu0 0
    %543 = vmatprep.subr.bf16.mxu0 0
    %544 = vmatpush1.bf16.msra.mxu0 0
    %545 = vmatprep.subr.bf16.mxu0 0
    %546 = vmatpush1.bf16.msra.mxu0 0
    %547 = vmatprep.subr.bf16.mxu0 0
    %548 = vmatpush1.bf16.msra.mxu0 %v531
    %549 = vmatprep.subr.bf16.mxu0 0
    %550 = vmatpush2.bf16.msra.mxu0 0
    %551 = vmatprep.subr.bf16.mxu0 0
    %552 = vmatpush2.bf16.msra.mxu0 0
    %553 = vmatprep.subr.bf16.mxu0 0
    %554 = vmatpush2.bf16.msra.mxu0 0
    %555 = vmatprep.subr.bf16.mxu0 0
    %556 = vmatpush2.bf16.msra.mxu0 0
    %557 = vmatprep.subr.bf16.mxu0 0
    %558 = vmatpush2.bf16.msra.mxu0 0
    %559 = vmatprep.subr.bf16.mxu0 0
    %560 = vmatpush2.bf16.msra.mxu0 0
    %561 = vmatprep.subr.bf16.mxu0 0
    %562 = vmatpush2.bf16.msra.mxu0 0
    %563 = vmatprep.subr.bf16.mxu0 0
    %564 = vmatpush2.bf16.msra.mxu0 0
    %565 = vmatprep.mubr.bf16.mxu0 0
    %566 = vmatmul.mubr.bf16.gmra.mxu0 %v528
    %v567 = vpop.f32.mrf.mxu0
    %v568 = vadd.f32 0.0, %v567
    %v569 = vpop.f32.mrf.mxu0
    %v570 = vpop.f32.mrf.mxu0
    %v571 = vpop.f32.mrf.mxu0
    %572 = vdwg.mxu0
    %573 = vrot.lane.b32.xlu0 %v168, 56
    %v574 = vpop.permute.xlu0 %573
    %v576 = vsel %vm172, %v524, 0
    %v579 = vsel %vm303, %v574, 0
    %581 = vmatprep.subr.bf16.mxu0 0
    %582 = vmatpush1.bf16.msra.mxu0 0
    %583 = vmatprep.subr.bf16.mxu0 0
    %584 = vmatpush1.bf16.msra.mxu0 0
    %585 = vmatprep.subr.bf16.mxu0 0
    %586 = vmatpush1.bf16.msra.mxu0 0
    %587 = vmatprep.subr.bf16.mxu0 0
    %588 = vmatpush1.bf16.msra.mxu0 0
    %589 = vmatprep.subr.bf16.mxu0 0
    %590 = vmatpush1.bf16.msra.mxu0 0
    %591 = vmatprep.subr.bf16.mxu0 0
    %592 = vmatpush1.bf16.msra.mxu0 0
    %593 = vmatprep.subr.bf16.mxu0 0
    %594 = vmatpush1.bf16.msra.mxu0 0
    %595 = vmatprep.subr.bf16.mxu0 0
    %596 = vmatpush1.bf16.msra.mxu0 %v579
    %597 = vmatprep.subr.bf16.mxu0 0
    %598 = vmatpush2.bf16.msra.mxu0 0
    %599 = vmatprep.subr.bf16.mxu0 0
    %600 = vmatpush2.bf16.msra.mxu0 0
    %601 = vmatprep.subr.bf16.mxu0 0
    %602 = vmatpush2.bf16.msra.mxu0 0
    %603 = vmatprep.subr.bf16.mxu0 0
    %604 = vmatpush2.bf16.msra.mxu0 0
    %605 = vmatprep.subr.bf16.mxu0 0
    %606 = vmatpush2.bf16.msra.mxu0 0
    %607 = vmatprep.subr.bf16.mxu0 0
    %608 = vmatpush2.bf16.msra.mxu0 0
    %609 = vmatprep.subr.bf16.mxu0 0
    %610 = vmatpush2.bf16.msra.mxu0 0
    %611 = vmatprep.subr.bf16.mxu0 0
    %612 = vmatpush2.bf16.msra.mxu0 0
    %613 = vmatprep.mubr.bf16.mxu0 0
    %614 = vmatmul.mubr.bf16.gmra.mxu0 %v576
    %v615 = vpop.f32.mrf.mxu0
    %v616 = vadd.f32 0.0, %v615
    %v617 = vpop.f32.mrf.mxu0
    %v618 = vpop.f32.mrf.mxu0
    %v619 = vpop.f32.mrf.mxu0
    %620 = vdwg.mxu0
    %623 = vrot.lane.b32.xlu0 %v568, 8
    %v624 = vpop.permute.xlu0 %623
    %625 = vrot.lane.b32.xlu0 %v616, 8
    %v626 = vpop.permute.xlu0 %625
    %vm629 = vcmask 130112
    %630 = vst.msk [vmem:[#allocation2] sm:$0xff] %vm629, %v624
    %631 = vst.msk [vmem:[#allocation2 + $0x8] sm:$0xff] %vm629, %v626
    %632 = vrot.lane.b32.xlu0 %v167, 112
    %v633 = vpop.permute.xlu0 %632
    %634 = vrot.lane.b32.xlu0 %v167, 80
    %v635 = vpop.permute.xlu0 %634
    %v637 = vsel %vm172, %v633, 0
    %v640 = vsel %vm172, %v635, 0
    %642 = vmatprep.subr.bf16.mxu0 0
    %643 = vmatpush1.bf16.xpose.msra.mxu0 0
    %644 = vmatprep.subr.bf16.mxu0 0
    %645 = vmatpush1.bf16.xpose.msra.mxu0 0
    %646 = vmatprep.subr.bf16.mxu0 0
    %647 = vmatpush1.bf16.xpose.msra.mxu0 0
    %648 = vmatprep.subr.bf16.mxu0 0
    %649 = vmatpush1.bf16.xpose.msra.mxu0 0
    %650 = vmatprep.subr.bf16.mxu0 0
    %651 = vmatpush1.bf16.xpose.msra.mxu0 0
    %652 = vmatprep.subr.bf16.mxu0 0
    %653 = vmatpush1.bf16.xpose.msra.mxu0 0
    %654 = vmatprep.subr.bf16.mxu0 0
    %655 = vmatpush1.bf16.xpose.msra.mxu0 0
    %656 = vmatprep.subr.bf16.mxu0 0
    %657 = vmatpush1.bf16.xpose.msra.mxu0 %v640
    %658 = vmatprep.subr.bf16.mxu0 0
    %659 = vmatpush2.bf16.xpose.msra.mxu0 0
    %660 = vmatprep.subr.bf16.mxu0 0
    %661 = vmatpush2.bf16.xpose.msra.mxu0 0
    %662 = vmatprep.subr.bf16.mxu0 0
    %663 = vmatpush2.bf16.xpose.msra.mxu0 0
    %664 = vmatprep.subr.bf16.mxu0 0
    %665 = vmatpush2.bf16.xpose.msra.mxu0 0
    %666 = vmatprep.subr.bf16.mxu0 0
    %667 = vmatpush2.bf16.xpose.msra.mxu0 0
    %668 = vmatprep.subr.bf16.mxu0 0
    %669 = vmatpush2.bf16.xpose.msra.mxu0 0
    %670 = vmatprep.subr.bf16.mxu0 0
    %671 = vmatpush2.bf16.xpose.msra.mxu0 0
    %672 = vmatprep.subr.bf16.mxu0 0
    %673 = vmatpush2.bf16.xpose.msra.mxu0 0
    %674 = vmatprep.mubr.bf16.mxu0 0
    %675 = vmatmul.mubr.bf16.gmra.mxu0 %v637
    %v676 = vpop.f32.mrf.mxu0
    %v677 = vadd.f32 0.0, %v676
    %v678 = vpop.f32.mrf.mxu0
    %v679 = vpop.f32.mrf.mxu0
    %v680 = vpop.f32.mrf.mxu0
    %681 = vdwg.mxu0
    %682 = vrot.lane.b32.xlu0 %v168, 112
    %v683 = vpop.permute.xlu0 %682
    %684 = vrot.lane.b32.xlu0 %v168, 80
    %v685 = vpop.permute.xlu0 %684
    %v687 = vsel %vm172, %v683, 0
    %v690 = vsel %vm172, %v685, 0
    %692 = vmatprep.subr.bf16.mxu0 0
    %693 = vmatpush1.bf16.xpose.msra.mxu0 0
    %694 = vmatprep.subr.bf16.mxu0 0
    %695 = vmatpush1.bf16.xpose.msra.mxu0 0
    %696 = vmatprep.subr.bf16.mxu0 0
    %697 = vmatpush1.bf16.xpose.msra.mxu0 0
    %698 = vmatprep.subr.bf16.mxu0 0
    %699 = vmatpush1.bf16.xpose.msra.mxu0 0
    %700 = vmatprep.subr.bf16.mxu0 0
    %701 = vmatpush1.bf16.xpose.msra.mxu0 0
    %702 = vmatprep.subr.bf16.mxu0 0
    %703 = vmatpush1.bf16.xpose.msra.mxu0 0
    %704 = vmatprep.subr.bf16.mxu0 0
    %705 = vmatpush1.bf16.xpose.msra.mxu0 0
    %706 = vmatprep.subr.bf16.mxu0 0
    %707 = vmatpush1.bf16.xpose.msra.mxu0 %v690
    %708 = vmatprep.subr.bf16.mxu0 0
    %709 = vmatpush2.bf16.xpose.msra.mxu0 0
    %710 = vmatprep.subr.bf16.mxu0 0
    %711 = vmatpush2.bf16.xpose.msra.mxu0 0
    %712 = vmatprep.subr.bf16.mxu0 0
    %713 = vmatpush2.bf16.xpose.msra.mxu0 0
    %714 = vmatprep.subr.bf16.mxu0 0
    %715 = vmatpush2.bf16.xpose.msra.mxu0 0
    %716 = vmatprep.subr.bf16.mxu0 0
    %717 = vmatpush2.bf16.xpose.msra.mxu0 0
    %718 = vmatprep.subr.bf16.mxu0 0
    %719 = vmatpush2.bf16.xpose.msra.mxu0 0
    %720 = vmatprep.subr.bf16.mxu0 0
    %721 = vmatpush2.bf16.xpose.msra.mxu0 0
    %722 = vmatprep.subr.bf16.mxu0 0
    %723 = vmatpush2.bf16.xpose.msra.mxu0 0
    %724 = vmatprep.mubr.bf16.mxu0 0
    %725 = vmatmul.mubr.bf16.gmra.mxu0 %v687
    %v726 = vpop.f32.mrf.mxu0
    %v727 = vadd.f32 0.0, %v726
    %v728 = vpop.f32.mrf.mxu0
    %v729 = vpop.f32.mrf.mxu0
    %v730 = vpop.f32.mrf.mxu0
    %731 = vdwg.mxu0
    %v732 = vmul.f32 %v677, 0.35355338
    %v733 = vmul.f32 %v727, 0.35355338
    %v734 = vsel %vm271, -1e+30, %v732
    %v735 = vsel %vm271, -1e+30, %v733
    %v736 = vsel %vm172, %v734, -inf
    %737 = vmax.xlane.f32.xlu0 %v736
    %v738 = vpop.xlane.xlu0 %737
    %v739 = vsel %vm172, %v735, -inf
    %740 = vmax.xlane.f32.xlu0 %v739
    %v741 = vpop.xlane.xlu0 %740
    %v742 = vsub.f32 %v734, %v738
    %v743 = vsub.f32 %v735, %v741
    %v744 = vmul.f32 %v742, 1.442695
    %v745 = vpow.pop %v744
    %v746 = vmul.f32 %v743, 1.442695
    %v747 = vpow.pop %v746
    %v748 = vsel %vm172, %v745, 0.0
    %749 = vadd.xlane.f32.xlu0 %v748
    %v750 = vpop.xlane.xlu0 %749
    %v751 = vsel %vm172, %v747, 0.0
    %752 = vadd.xlane.f32.xlu0 %v751
    %v753 = vpop.xlane.xlu0 %752
    %v754 = vrcp.pop %v750
    %v755 = vrcp.pop %v753
    %v756 = vmul.f32 %v745, %v754
    %v757 = vmul.f32 %v747, %v755
    %v758 = vpack.c.bf16 %v756, %v756
    %v759 = vpack.c.bf16 %v757, %v757
    %760 = vrot.lane.b32.xlu0 %v167, 48
    %v761 = vpop.permute.xlu0 %760
    %v763 = vsel %vm172, %v758, 0
    %v766 = vsel %vm303, %v761, 0
    %768 = vmatprep.subr.bf16.mxu0 0
    %769 = vmatpush1.bf16.msra.mxu0 0
    %770 = vmatprep.subr.bf16.mxu0 0
    %771 = vmatpush1.bf16.msra.mxu0 0
    %772 = vmatprep.subr.bf16.mxu0 0
    %773 = vmatpush1.bf16.msra.mxu0 0
    %774 = vmatprep.subr.bf16.mxu0 0
    %775 = vmatpush1.bf16.msra.mxu0 0
    %776 = vmatprep.subr.bf16.mxu0 0
    %777 = vmatpush1.bf16.msra.mxu0 0
    %778 = vmatprep.subr.bf16.mxu0 0
    %779 = vmatpush1.bf16.msra.mxu0 0
    %780 = vmatprep.subr.bf16.mxu0 0
    %781 = vmatpush1.bf16.msra.mxu0 0
    %782 = vmatprep.subr.bf16.mxu0 0
    %783 = vmatpush1.bf16.msra.mxu0 %v766
    %784 = vmatprep.subr.bf16.mxu0 0
    %785 = vmatpush2.bf16.msra.mxu0 0
    %786 = vmatprep.subr.bf16.mxu0 0
    %787 = vmatpush2.bf16.msra.mxu0 0
    %788 = vmatprep.subr.bf16.mxu0 0
    %789 = vmatpush2.bf16.msra.mxu0 0
    %790 = vmatprep.subr.bf16.mxu0 0
    %791 = vmatpush2.bf16.msra.mxu0 0
    %792 = vmatprep.subr.bf16.mxu0 0
    %793 = vmatpush2.bf16.msra.mxu0 0
    %794 = vmatprep.subr.bf16.mxu0 0
    %795 = vmatpush2.bf16.msra.mxu0 0
    %796 = vmatprep.subr.bf16.mxu0 0
    %797 = vmatpush2.bf16.msra.mxu0 0
    %798 = vmatprep.subr.bf16.mxu0 0
    %799 = vmatpush2.bf16.msra.mxu0 0
    %800 = vmatprep.mubr.bf16.mxu0 0
    %801 = vmatmul.mubr.bf16.gmra.mxu0 %v763
    %v802 = vpop.f32.mrf.mxu0
    %v803 = vadd.f32 0.0, %v802
    %v804 = vpop.f32.mrf.mxu0
    %v805 = vpop.f32.mrf.mxu0
    %v806 = vpop.f32.mrf.mxu0
    %807 = vdwg.mxu0
    %808 = vrot.lane.b32.xlu0 %v168, 48
    %v809 = vpop.permute.xlu0 %808
    %v811 = vsel %vm172, %v759, 0
    %v814 = vsel %vm303, %v809, 0
    %816 = vmatprep.subr.bf16.mxu0 0
    %817 = vmatpush1.bf16.msra.mxu0 0
    %818 = vmatprep.subr.bf16.mxu0 0
    %819 = vmatpush1.bf16.msra.mxu0 0
    %820 = vmatprep.subr.bf16.mxu0 0
    %821 = vmatpush1.bf16.msra.mxu0 0
    %822 = vmatprep.subr.bf16.mxu0 0
    %823 = vmatpush1.bf16.msra.mxu0 0
    %824 = vmatprep.subr.bf16.mxu0 0
    %825 = vmatpush1.bf16.msra.mxu0 0
    %826 = vmatprep.subr.bf16.mxu0 0
    %827 = vmatpush1.bf16.msra.mxu0 0
    %828 = vmatprep.subr.bf16.mxu0 0
    %829 = vmatpush1.bf16.msra.mxu0 0
    %830 = vmatprep.subr.bf16.mxu0 0
    %831 = vmatpush1.bf16.msra.mxu0 %v814
    %832 = vmatprep.subr.bf16.mxu0 0
    %833 = vmatpush2.bf16.msra.mxu0 0
    %834 = vmatprep.subr.bf16.mxu0 0
    %835 = vmatpush2.bf16.msra.mxu0 0
    %836 = vmatprep.subr.bf16.mxu0 0
    %837 = vmatpush2.bf16.msra.mxu0 0
    %838 = vmatprep.subr.bf16.mxu0 0
    %839 = vmatpush2.bf16.msra.mxu0 0
    %840 = vmatprep.subr.bf16.mxu0 0
    %841 = vmatpush2.bf16.msra.mxu0 0
    %842 = vmatprep.subr.bf16.mxu0 0
    %843 = vmatpush2.bf16.msra.mxu0 0
    %844 = vmatprep.subr.bf16.mxu0 0
    %845 = vmatpush2.bf16.msra.mxu0 0
    %846 = vmatprep.subr.bf16.mxu0 0
    %847 = vmatpush2.bf16.msra.mxu0 0
    %848 = vmatprep.mubr.bf16.mxu0 0
    %849 = vmatmul.mubr.bf16.gmra.mxu0 %v811
    %v850 = vpop.f32.mrf.mxu0
    %v851 = vadd.f32 0.0, %v850
    %v852 = vpop.f32.mrf.mxu0
    %v853 = vpop.f32.mrf.mxu0
    %v854 = vpop.f32.mrf.mxu0
    %855 = vdwg.mxu0
    %858 = vrot.lane.b32.xlu0 %v803, 16
    %v859 = vpop.permute.xlu0 %858
    %860 = vrot.lane.b32.xlu0 %v851, 16
    %v861 = vpop.permute.xlu0 %860
    %vm864 = vcmask 195712
    %865 = vst.msk [vmem:[#allocation2] sm:$0xff] %vm864, %v859
    %866 = vst.msk [vmem:[#allocation2 + $0x8] sm:$0xff] %vm864, %v861
    %867 = vrot.lane.b32.xlu0 %v167, 104
    %v868 = vpop.permute.xlu0 %867
    %869 = vrot.lane.b32.xlu0 %v167, 72
    %v870 = vpop.permute.xlu0 %869
    %v872 = vsel %vm172, %v868, 0
    %v875 = vsel %vm172, %v870, 0
    %877 = vmatprep.subr.bf16.mxu0 0
    %878 = vmatpush1.bf16.xpose.msra.mxu0 0
    %879 = vmatprep.subr.bf16.mxu0 0
    %880 = vmatpush1.bf16.xpose.msra.mxu0 0
    %881 = vmatprep.subr.bf16.mxu0 0
    %882 = vmatpush1.bf16.xpose.msra.mxu0 0
    %883 = vmatprep.subr.bf16.mxu0 0
    %884 = vmatpush1.bf16.xpose.msra.mxu0 0
    %885 = vmatprep.subr.bf16.mxu0 0
    %886 = vmatpush1.bf16.xpose.msra.mxu0 0
    %887 = vmatprep.subr.bf16.mxu0 0
    %888 = vmatpush1.bf16.xpose.msra.mxu0 0
    %889 = vmatprep.subr.bf16.mxu0 0
    %890 = vmatpush1.bf16.xpose.msra.mxu0 0
    %891 = vmatprep.subr.bf16.mxu0 0
    %892 = vmatpush1.bf16.xpose.msra.mxu0 %v875
    %893 = vmatprep.subr.bf16.mxu0 0
    %894 = vmatpush2.bf16.xpose.msra.mxu0 0
    %895 = vmatprep.subr.bf16.mxu0 0
    %896 = vmatpush2.bf16.xpose.msra.mxu0 0
    %897 = vmatprep.subr.bf16.mxu0 0
    %898 = vmatpush2.bf16.xpose.msra.mxu0 0
    %899 = vmatprep.subr.bf16.mxu0 0
    %900 = vmatpush2.bf16.xpose.msra.mxu0 0
    %901 = vmatprep.subr.bf16.mxu0 0
    %902 = vmatpush2.bf16.xpose.msra.mxu0 0
    %903 = vmatprep.subr.bf16.mxu0 0
    %904 = vmatpush2.bf16.xpose.msra.mxu0 0
    %905 = vmatprep.subr.bf16.mxu0 0
    %906 = vmatpush2.bf16.xpose.msra.mxu0 0
    %907 = vmatprep.subr.bf16.mxu0 0
    %908 = vmatpush2.bf16.xpose.msra.mxu0 0
    %909 = vmatprep.mubr.bf16.mxu0 0
    %910 = vmatmul.mubr.bf16.gmra.mxu0 %v872
    %v911 = vpop.f32.mrf.mxu0
    %v912 = vadd.f32 0.0, %v911
    %v913 = vpop.f32.mrf.mxu0
    %v914 = vpop.f32.mrf.mxu0
    %v915 = vpop.f32.mrf.mxu0
    %916 = vdwg.mxu0
    %917 = vrot.lane.b32.xlu0 %v168, 104
    %v918 = vpop.permute.xlu0 %917
    %919 = vrot.lane.b32.xlu0 %v168, 72
    %v920 = vpop.permute.xlu0 %919
    %v922 = vsel %vm172, %v918, 0
    %v925 = vsel %vm172, %v920, 0
    %927 = vmatprep.subr.bf16.mxu0 0
    %928 = vmatpush1.bf16.xpose.msra.mxu0 0
    %929 = vmatprep.subr.bf16.mxu0 0
    %930 = vmatpush1.bf16.xpose.msra.mxu0 0
    %931 = vmatprep.subr.bf16.mxu0 0
    %932 = vmatpush1.bf16.xpose.msra.mxu0 0
    %933 = vmatprep.subr.bf16.mxu0 0
    %934 = vmatpush1.bf16.xpose.msra.mxu0 0
    %935 = vmatprep.subr.bf16.mxu0 0
    %936 = vmatpush1.bf16.xpose.msra.mxu0 0
    %937 = vmatprep.subr.bf16.mxu0 0
    %938 = vmatpush1.bf16.xpose.msra.mxu0 0
    %939 = vmatprep.subr.bf16.mxu0 0
    %940 = vmatpush1.bf16.xpose.msra.mxu0 0
    %941 = vmatprep.subr.bf16.mxu0 0
    %942 = vmatpush1.bf16.xpose.msra.mxu0 %v925
    %943 = vmatprep.subr.bf16.mxu0 0
    %944 = vmatpush2.bf16.xpose.msra.mxu0 0
    %945 = vmatprep.subr.bf16.mxu0 0
    %946 = vmatpush2.bf16.xpose.msra.mxu0 0
    %947 = vmatprep.subr.bf16.mxu0 0
    %948 = vmatpush2.bf16.xpose.msra.mxu0 0
    %949 = vmatprep.subr.bf16.mxu0 0
    %950 = vmatpush2.bf16.xpose.msra.mxu0 0
    %951 = vmatprep.subr.bf16.mxu0 0
    %952 = vmatpush2.bf16.xpose.msra.mxu0 0
    %953 = vmatprep.subr.bf16.mxu0 0
    %954 = vmatpush2.bf16.xpose.msra.mxu0 0
    %955 = vmatprep.subr.bf16.mxu0 0
    %956 = vmatpush2.bf16.xpose.msra.mxu0 0
    %957 = vmatprep.subr.bf16.mxu0 0
    %958 = vmatpush2.bf16.xpose.msra.mxu0 0
    %959 = vmatprep.mubr.bf16.mxu0 0
    %960 = vmatmul.mubr.bf16.gmra.mxu0 %v922
    %v961 = vpop.f32.mrf.mxu0
    %v962 = vadd.f32 0.0, %v961
    %v963 = vpop.f32.mrf.mxu0
    %v964 = vpop.f32.mrf.mxu0
    %v965 = vpop.f32.mrf.mxu0
    %966 = vdwg.mxu0
    %v967 = vmul.f32 %v912, 0.35355338
    %v968 = vmul.f32 %v962, 0.35355338
    %v969 = vsel %vm271, -1e+30, %v967
    %v970 = vsel %vm271, -1e+30, %v968
    %v971 = vsel %vm172, %v969, -inf
    %972 = vmax.xlane.f32.xlu0 %v971
    %v973 = vpop.xlane.xlu0 %972
    %v974 = vsel %vm172, %v970, -inf
    %975 = vmax.xlane.f32.xlu0 %v974
    %v976 = vpop.xlane.xlu0 %975
    %v977 = vsub.f32 %v969, %v973
    %v978 = vsub.f32 %v970, %v976
    %v979 = vmul.f32 %v977, 1.442695
    %v980 = vpow.pop %v979
    %v981 = vmul.f32 %v978, 1.442695
    %v982 = vpow.pop %v981
    %v983 = vsel %vm172, %v980, 0.0
    %984 = vadd.xlane.f32.xlu0 %v983
    %v985 = vpop.xlane.xlu0 %984
    %v986 = vsel %vm172, %v982, 0.0
    %987 = vadd.xlane.f32.xlu0 %v986
    %v988 = vpop.xlane.xlu0 %987
    %v989 = vrcp.pop %v985
    %v990 = vrcp.pop %v988
    %v991 = vmul.f32 %v980, %v989
    %v992 = vmul.f32 %v982, %v990
    %v993 = vpack.c.bf16 %v991, %v991
    %v994 = vpack.c.bf16 %v992, %v992
    %995 = vrot.lane.b32.xlu0 %v167, 40
    %v996 = vpop.permute.xlu0 %995
    %v998 = vsel %vm172, %v993, 0
    %v1001 = vsel %vm303, %v996, 0
    %1003 = vmatprep.subr.bf16.mxu0 0
    %1004 = vmatpush1.bf16.msra.mxu0 0
    %1005 = vmatprep.subr.bf16.mxu0 0
    %1006 = vmatpush1.bf16.msra.mxu0 0
    %1007 = vmatprep.subr.bf16.mxu0 0
    %1008 = vmatpush1.bf16.msra.mxu0 0
    %1009 = vmatprep.subr.bf16.mxu0 0
    %1010 = vmatpush1.bf16.msra.mxu0 0
    %1011 = vmatprep.subr.bf16.mxu0 0
    %1012 = vmatpush1.bf16.msra.mxu0 0
    %1013 = vmatprep.subr.bf16.mxu0 0
    %1014 = vmatpush1.bf16.msra.mxu0 0
    %1015 = vmatprep.subr.bf16.mxu0 0
    %1016 = vmatpush1.bf16.msra.mxu0 0
    %1017 = vmatprep.subr.bf16.mxu0 0
    %1018 = vmatpush1.bf16.msra.mxu0 %v1001
    %1019 = vmatprep.subr.bf16.mxu0 0
    %1020 = vmatpush2.bf16.msra.mxu0 0
    %1021 = vmatprep.subr.bf16.mxu0 0
    %1022 = vmatpush2.bf16.msra.mxu0 0
    %1023 = vmatprep.subr.bf16.mxu0 0
    %1024 = vmatpush2.bf16.msra.mxu0 0
    %1025 = vmatprep.subr.bf16.mxu0 0
    %1026 = vmatpush2.bf16.msra.mxu0 0
    %1027 = vmatprep.subr.bf16.mxu0 0
    %1028 = vmatpush2.bf16.msra.mxu0 0
    %1029 = vmatprep.subr.bf16.mxu0 0
    %1030 = vmatpush2.bf16.msra.mxu0 0
    %1031 = vmatprep.subr.bf16.mxu0 0
    %1032 = vmatpush2.bf16.msra.mxu0 0
    %1033 = vmatprep.subr.bf16.mxu0 0
    %1034 = vmatpush2.bf16.msra.mxu0 0
    %1035 = vmatprep.mubr.bf16.mxu0 0
    %1036 = vmatmul.mubr.bf16.gmra.mxu0 %v998
    %v1037 = vpop.f32.mrf.mxu0
    %v1038 = vadd.f32 0.0, %v1037
    %v1039 = vpop.f32.mrf.mxu0
    %v1040 = vpop.f32.mrf.mxu0
    %v1041 = vpop.f32.mrf.mxu0
    %1042 = vdwg.mxu0
    %1043 = vrot.lane.b32.xlu0 %v168, 40
    %v1044 = vpop.permute.xlu0 %1043
    %v1046 = vsel %vm172, %v994, 0
    %v1049 = vsel %vm303, %v1044, 0
    %1051 = vmatprep.subr.bf16.mxu0 0
    %1052 = vmatpush1.bf16.msra.mxu0 0
    %1053 = vmatprep.subr.bf16.mxu0 0
    %1054 = vmatpush1.bf16.msra.mxu0 0
    %1055 = vmatprep.subr.bf16.mxu0 0
    %1056 = vmatpush1.bf16.msra.mxu0 0
    %1057 = vmatprep.subr.bf16.mxu0 0
    %1058 = vmatpush1.bf16.msra.mxu0 0
    %1059 = vmatprep.subr.bf16.mxu0 0
    %1060 = vmatpush1.bf16.msra.mxu0 0
    %1061 = vmatprep.subr.bf16.mxu0 0
    %1062 = vmatpush1.bf16.msra.mxu0 0
    %1063 = vmatprep.subr.bf16.mxu0 0
    %1064 = vmatpush1.bf16.msra.mxu0 0
    %1065 = vmatprep.subr.bf16.mxu0 0
    %1066 = vmatpush1.bf16.msra.mxu0 %v1049
    %1067 = vmatprep.subr.bf16.mxu0 0
    %1068 = vmatpush2.bf16.msra.mxu0 0
    %1069 = vmatprep.subr.bf16.mxu0 0
    %1070 = vmatpush2.bf16.msra.mxu0 0
    %1071 = vmatprep.subr.bf16.mxu0 0
    %1072 = vmatpush2.bf16.msra.mxu0 0
    %1073 = vmatprep.subr.bf16.mxu0 0
    %1074 = vmatpush2.bf16.msra.mxu0 0
    %1075 = vmatprep.subr.bf16.mxu0 0
    %1076 = vmatpush2.bf16.msra.mxu0 0
    %1077 = vmatprep.subr.bf16.mxu0 0
    %1078 = vmatpush2.bf16.msra.mxu0 0
    %1079 = vmatprep.subr.bf16.mxu0 0
    %1080 = vmatpush2.bf16.msra.mxu0 0
    %1081 = vmatprep.subr.bf16.mxu0 0
    %1082 = vmatpush2.bf16.msra.mxu0 0
    %1083 = vmatprep.mubr.bf16.mxu0 0
    %1084 = vmatmul.mubr.bf16.gmra.mxu0 %v1046
    %v1085 = vpop.f32.mrf.mxu0
    %v1086 = vadd.f32 0.0, %v1085
    %v1087 = vpop.f32.mrf.mxu0
    %v1088 = vpop.f32.mrf.mxu0
    %v1089 = vpop.f32.mrf.mxu0
    %1090 = vdwg.mxu0
    %1093 = vrot.lane.b32.xlu0 %v1038, 24
    %v1094 = vpop.permute.xlu0 %1093
    %1095 = vrot.lane.b32.xlu0 %v1086, 24
    %v1096 = vpop.permute.xlu0 %1095
    %vm1099 = vcmask 261312
    %1100 = vst.msk [vmem:[#allocation2] sm:$0xff] %vm1099, %v1094
    %1101 = vst.msk [vmem:[#allocation2 + $0x8] sm:$0xff] %vm1099, %v1096
    %v1102 = vld [vmem:[#allocation2] sm:$0xff]
    %v1103 = vld [vmem:[#allocation2 + $0x8] sm:$0xff]
    %v1104 = vpack.c.bf16 %v1103, %v1102
    %v1105 = vld [vmem:[%s7] sm:$0xf]
    %v1106 = vld [vmem:[%s7 + $0x4] sm:$0xf]
    %v1107 = vld [vmem:[%s7 + $0x8] sm:$0xf]
    %v1108 = vld [vmem:[%s7 + $0xc] sm:$0xf]
    %v1109 = vld [vmem:[%s8] sm:$0x1]
    %v1111 = vlaneseq
    %v1112 = vshrl.u32 %v1111, 7
    %v1113 = vsub.s32 0, %v1112
    %v1114 = vrot.slane %v1109, %v1113
    %v1120 = vunpack.c.l.b16 %v1105
    %v1121 = vunpack.c.l.b16 %v1106
    %v1122 = vunpack.c.l.b16 %v1107
    %v1123 = vunpack.c.l.b16 %v1108
    %v1124 = vpack.c.b16 %v1121, %v1120
    %v1125 = vpack.c.b16 %v1123, %v1122
    %v1129 = vsel %vm50, %v1104, 0
    %1131 = vmatprep.subr.bf16.mxu0 0
    %1132 = vmatpush1.bf16.msra.mxu0 0
    %1133 = vmatprep.subr.bf16.mxu0 0
    %1134 = vmatpush1.bf16.msra.mxu0 0
    %1135 = vmatprep.subr.bf16.mxu0 0
    %1136 = vmatpush1.bf16.msra.mxu0 0
    %1137 = vmatprep.subr.bf16.mxu0 0
    %1138 = vmatpush1.bf16.msra.mxu0 0
    %1139 = vmatprep.subr.bf16.mxu0 0
    %1140 = vmatpush1.bf16.msra.mxu0 0
    %1141 = vmatprep.subr.bf16.mxu0 0
    %1142 = vmatpush1.bf16.msra.mxu0 0
    %1143 = vmatprep.subr.bf16.mxu0 0
    %1144 = vmatpush1.bf16.msra.mxu0 %v1125
    %1145 = vmatprep.subr.bf16.mxu0 0
    %1146 = vmatpush1.bf16.msra.mxu0 %v1124
    %1147 = vmatprep.subr.bf16.mxu0 0
    %1148 = vmatpush2.bf16.msra.mxu0 0
    %1149 = vmatprep.subr.bf16.mxu0 0
    %1150 = vmatpush2.bf16.msra.mxu0 0
    %1151 = vmatprep.subr.bf16.mxu0 0
    %1152 = vmatpush2.bf16.msra.mxu0 0
    %1153 = vmatprep.subr.bf16.mxu0 0
    %1154 = vmatpush2.bf16.msra.mxu0 0
    %1155 = vmatprep.subr.bf16.mxu0 0
    %1156 = vmatpush2.bf16.msra.mxu0 0
    %1157 = vmatprep.subr.bf16.mxu0 0
    %1158 = vmatpush2.bf16.msra.mxu0 0
    %1159 = vmatprep.subr.bf16.mxu0 0
    %1160 = vmatpush2.bf16.msra.mxu0 0
    %1161 = vmatprep.subr.bf16.mxu0 0
    %1162 = vmatpush2.bf16.msra.mxu0 0
    %1163 = vmatprep.mubr.bf16.mxu0 0
    %1164 = vmatmul.mubr.bf16.gmra.mxu0 %v1129
    %v1165 = vpop.f32.mrf.mxu0
    %v1166 = vadd.f32 %v1114, %v1165
    %v1167 = vpop.f32.mrf.mxu0
    %v1168 = vpop.f32.mrf.mxu0
    %v1169 = vadd.f32 %v1114, %v1168
    %v1170 = vpop.f32.mrf.mxu0
    %1171 = vdwg.mxu0
    %v1172 = vadd.f32 %v46, %v1166
    %v1173 = vadd.f32 %v47, %v1169
    %v1174 = vld [vmem:[%s3] sm:$0x1]
    %v1175 = vld [vmem:[%s4] sm:$0x1]
    %v1176 = vsel %vm50, %v1172, 0.0
    %1177 = vadd.xlane.f32.xlu0 %v1176
    %v1178 = vpop.xlane.xlu0 %1177
    %v1179 = vsel %vm50, %v1173, 0.0
    %1180 = vadd.xlane.f32.xlu0 %v1179
    %v1181 = vpop.xlane.xlu0 %1180
    %v1182 = vmul.f32 %v1178, %v57
    %v1183 = vmul.f32 %v1181, %v57
    %v1184 = vsub.f32 %v1172, %v1182
    %v1185 = vsub.f32 %v1173, %v1183
    %v1186 = vmul.f32 %v1184, %v1184
    %v1187 = vmul.f32 %v1185, %v1185
    %v1188 = vsel %vm50, %v1186, 0.0
    %1189 = vadd.xlane.f32.xlu0 %v1188
    %v1190 = vpop.xlane.xlu0 %1189
    %v1191 = vsel %vm50, %v1187, 0.0
    %1192 = vadd.xlane.f32.xlu0 %v1191
    %v1193 = vpop.xlane.xlu0 %1192
    %v1194 = vmul.f32 %v1190, %v57
    %v1195 = vmul.f32 %v1193, %v57
    %v1196 = vadd.f32 %v1194, 1e-05
    %v1197 = vadd.f32 %v1195, 1e-05
    %v1198 = vrsqrt.pop %v1196
    %v1199 = vrsqrt.pop %v1197
    %v1200 = vmul.f32 %v1184, %v1198
    %v1201 = vmul.f32 %v1185, %v1199
    %v1203 = vlaneseq
    %v1204 = vshrl.u32 %v1203, 7
    %v1205 = vsub.s32 0, %v1204
    %v1206 = vrot.slane %v1174, %v1205
    %v1208 = vmul.f32 %v1200, %v1206
    %v1209 = vmul.f32 %v1201, %v1206
    %v1211 = vlaneseq
    %v1212 = vshrl.u32 %v1211, 7
    %v1213 = vsub.s32 0, %v1212
    %v1214 = vrot.slane %v1175, %v1213
    %v1216 = vadd.f32 %v1208, %v1214
    %v1217 = vadd.f32 %v1209, %v1214
    %v1218 = vpack.c.bf16 %v1217, %v1216
    %v1219 = vld [vmem:[%s9] sm:$0xf]
    %v1220 = vld [vmem:[%s9 + $0x4] sm:$0xf]
    %v1221 = vld [vmem:[%s9 + $0x8] sm:$0xf]
    %v1222 = vld [vmem:[%s9 + $0xc] sm:$0xf]
    %v1223 = vld [vmem:[%s10] sm:$0x1]
    %v1225 = vlaneseq
    %v1226 = vshrl.u32 %v1225, 7
    %v1227 = vsub.s32 0, %v1226
    %v1228 = vrot.slane %v1223, %v1227
    %v1234 = vunpack.c.l.b16 %v1219
    %v1235 = vunpack.c.l.b16 %v1220
    %v1236 = vunpack.c.l.b16 %v1221
    %v1237 = vunpack.c.l.b16 %v1222
    %v1238 = vpack.c.b16 %v1235, %v1234
    %v1239 = vpack.c.b16 %v1237, %v1236
    %v1243 = vsel %vm50, %v1218, 0
    %1245 = vmatprep.subr.bf16.mxu0 0
    %1246 = vmatpush1.bf16.msra.mxu0 0
    %1247 = vmatprep.subr.bf16.mxu0 0
    %1248 = vmatpush1.bf16.msra.mxu0 0
    %1249 = vmatprep.subr.bf16.mxu0 0
    %1250 = vmatpush1.bf16.msra.mxu0 0
    %1251 = vmatprep.subr.bf16.mxu0 0
    %1252 = vmatpush1.bf16.msra.mxu0 0
    %1253 = vmatprep.subr.bf16.mxu0 0
    %1254 = vmatpush1.bf16.msra.mxu0 0
    %1255 = vmatprep.subr.bf16.mxu0 0
    %1256 = vmatpush1.bf16.msra.mxu0 0
    %1257 = vmatprep.subr.bf16.mxu0 0
    %1258 = vmatpush1.bf16.msra.mxu0 %v1239
    %1259 = vmatprep.subr.bf16.mxu0 0
    %1260 = vmatpush1.bf16.msra.mxu0 %v1238
    %1261 = vmatprep.subr.bf16.mxu0 0
    %1262 = vmatpush2.bf16.msra.mxu0 0
    %1263 = vmatprep.subr.bf16.mxu0 0
    %1264 = vmatpush2.bf16.msra.mxu0 0
    %1265 = vmatprep.subr.bf16.mxu0 0
    %1266 = vmatpush2.bf16.msra.mxu0 0
    %1267 = vmatprep.subr.bf16.mxu0 0
    %1268 = vmatpush2.bf16.msra.mxu0 0
    %1269 = vmatprep.subr.bf16.mxu0 0
    %1270 = vmatpush2.bf16.msra.mxu0 0
    %1271 = vmatprep.subr.bf16.mxu0 0
    %1272 = vmatpush2.bf16.msra.mxu0 0
    %1273 = vmatprep.subr.bf16.mxu0 0
    %1274 = vmatpush2.bf16.msra.mxu0 0
    %1275 = vmatprep.subr.bf16.mxu0 0
    %1276 = vmatpush2.bf16.msra.mxu0 0
    %1277 = vmatprep.mubr.bf16.mxu0 0
    %1278 = vmatmul.mubr.bf16.gmra.mxu0 %v1243
    %v1279 = vpop.f32.mrf.mxu0
    %v1280 = vadd.f32 %v1228, %v1279
    %v1281 = vpop.f32.mrf.mxu0
    %v1282 = vpop.f32.mrf.mxu0
    %v1283 = vadd.f32 %v1228, %v1282
    %v1284 = vpop.f32.mrf.mxu0
    %1285 = vdwg.mxu0
    %v1286 = vmul.f32 %v1280, 0.5
    %v1287 = vmul.f32 %v1283, 0.5
    %v1288 = vmul.f32 %v1280, 0.70710677
    %v1289 = vmul.f32 %v1283, 0.70710677
    %v1290 = verf.f32.pop %v1288
    %v1291 = verf.f32.pop %v1289
    %v1292 = vadd.f32 %v1290, 1.0
    %v1293 = vadd.f32 %v1291, 1.0
    %v1294 = vmul.f32 %v1286, %v1292
    %v1295 = vmul.f32 %v1287, %v1293
    %v1296 = vpack.c.bf16 %v1295, %v1294
    %v1297 = vld [vmem:[%s11] sm:$0xf]
    %v1298 = vld [vmem:[%s11 + $0x4] sm:$0xf]
    %v1299 = vld [vmem:[%s11 + $0x8] sm:$0xf]
    %v1300 = vld [vmem:[%s11 + $0xc] sm:$0xf]
    %v1301 = vld [vmem:[%s11 + $0x10] sm:$0xf]
    %v1302 = vld [vmem:[%s11 + $0x14] sm:$0xf]
    %v1303 = vld [vmem:[%s11 + $0x18] sm:$0xf]
    %v1304 = vld [vmem:[%s11 + $0x1c] sm:$0xf]
    %v1305 = vld [vmem:[%s11 + $0x20] sm:$0xf]
    %v1306 = vld [vmem:[%s11 + $0x24] sm:$0xf]
    %v1307 = vld [vmem:[%s11 + $0x28] sm:$0xf]
    %v1308 = vld [vmem:[%s11 + $0x2c] sm:$0xf]
    %v1309 = vld [vmem:[%s11 + $0x30] sm:$0xf]
    %v1310 = vld [vmem:[%s11 + $0x34] sm:$0xf]
    %v1311 = vld [vmem:[%s11 + $0x38] sm:$0xf]
    %v1312 = vld [vmem:[%s11 + $0x3c] sm:$0xf]
    %v1313 = vld [vmem:[%s12] sm:$0x1]
    %v1315 = vlaneseq
    %v1316 = vshrl.u32 %v1315, 7
    %v1317 = vsub.s32 0, %v1316
    %v1318 = vrot.slane %v1313, %v1317
    %v1336 = vunpack.c.l.b16 %v1297
    %v1337 = vunpack.c.l.b16 %v1298
    %v1338 = vunpack.c.l.b16 %v1299
    %v1339 = vunpack.c.l.b16 %v1300
    %v1340 = vunpack.c.l.b16 %v1301
    %v1341 = vunpack.c.l.b16 %v1302
    %v1342 = vunpack.c.l.b16 %v1303
    %v1343 = vunpack.c.l.b16 %v1304
    %v1344 = vunpack.c.l.b16 %v1305
    %v1345 = vunpack.c.l.b16 %v1306
    %v1346 = vunpack.c.l.b16 %v1307
    %v1347 = vunpack.c.l.b16 %v1308
    %v1348 = vunpack.c.l.b16 %v1309
    %v1349 = vunpack.c.l.b16 %v1310
    %v1350 = vunpack.c.l.b16 %v1311
    %v1351 = vunpack.c.l.b16 %v1312
    %v1352 = vpack.c.b16 %v1337, %v1336
    %v1353 = vpack.c.b16 %v1339, %v1338
    %v1354 = vpack.c.b16 %v1341, %v1340
    %v1355 = vpack.c.b16 %v1343, %v1342
    %v1356 = vpack.c.b16 %v1345, %v1344
    %v1357 = vpack.c.b16 %v1347, %v1346
    %v1358 = vpack.c.b16 %v1349, %v1348
    %v1359 = vpack.c.b16 %v1351, %v1350
    %1368 = vmatprep.subr.bf16.mxu0 0
    %1369 = vmatpush1.bf16.msra.mxu0 %v1359
    %1370 = vmatprep.subr.bf16.mxu0 0
    %1371 = vmatpush1.bf16.msra.mxu0 %v1358
    %1372 = vmatprep.subr.bf16.mxu0 0
    %1373 = vmatpush1.bf16.msra.mxu0 %v1357
    %1374 = vmatprep.subr.bf16.mxu0 0
    %1375 = vmatpush1.bf16.msra.mxu0 %v1356
    %1376 = vmatprep.subr.bf16.mxu0 0
    %1377 = vmatpush1.bf16.msra.mxu0 %v1355
    %1378 = vmatprep.subr.bf16.mxu0 0
    %1379 = vmatpush1.bf16.msra.mxu0 %v1354
    %1380 = vmatprep.subr.bf16.mxu0 0
    %1381 = vmatpush1.bf16.msra.mxu0 %v1353
    %1382 = vmatprep.subr.bf16.mxu0 0
    %1383 = vmatpush1.bf16.msra.mxu0 %v1352
    %1384 = vmatprep.subr.bf16.mxu0 0
    %1385 = vmatpush2.bf16.msra.mxu0 0
    %1386 = vmatprep.subr.bf16.mxu0 0
    %1387 = vmatpush2.bf16.msra.mxu0 0
    %1388 = vmatprep.subr.bf16.mxu0 0
    %1389 = vmatpush2.bf16.msra.mxu0 0
    %1390 = vmatprep.subr.bf16.mxu0 0
    %1391 = vmatpush2.bf16.msra.mxu0 0
    %1392 = vmatprep.subr.bf16.mxu0 0
    %1393 = vmatpush2.bf16.msra.mxu0 0
    %1394 = vmatprep.subr.bf16.mxu0 0
    %1395 = vmatpush2.bf16.msra.mxu0 0
    %1396 = vmatprep.subr.bf16.mxu0 0
    %1397 = vmatpush2.bf16.msra.mxu0 0
    %1398 = vmatprep.subr.bf16.mxu0 0
    %1399 = vmatpush2.bf16.msra.mxu0 0
    %1400 = vmatprep.mubr.bf16.mxu0 0
    %1401 = vmatmul.mubr.bf16.gmra.mxu0 %v1296
    %v1402 = vpop.f32.mrf.mxu0
    %v1403 = vadd.f32 %v1318, %v1402
    %v1404 = vpop.f32.mrf.mxu0
    %v1405 = vpop.f32.mrf.mxu0
    %v1406 = vadd.f32 %v1318, %v1405
    %v1407 = vpop.f32.mrf.mxu0
    %1408 = vdwg.mxu0
    %v1409 = vadd.f32 %v1172, %v1403
    %v1410 = vadd.f32 %v1173, %v1406
    %1411 = vst.msk [vmem:[#allocation3] sm:$0xff] %vm50, %v1409
    %1412 = vst.msk [vmem:[#allocation3 + $0x8] sm:$0xff] %vm50, %v1410
    // Predicated region
    $region54: #{tpu_custom_call.1} parent=1 // pred_check
      _
    $region55: #{tpu_custom_call.1} parent=1 // pred_check_branch
      %1414 = sbr.rel (0) target = $region57
    $region56: #{tpu_custom_call.1} parent=1 // pred_region
      %s1416 = ssub.s32 256, 256
      %1417 = vsyncadd [#allocation4], %s1416
      %s1418 = sshll.u32 [#allocation3], 4
      %s1419 = int_to_ptr.vmem [resolvable:$true] %s1418
      %1424 = dma.vmem_to_hbm [thread:$0]  %s1419, 256, %s13, [#allocation4], 128, 128, 8
    $region57: #{tpu_custom_call.1} parent=1 // pred_fallthru
      _
    // Predicated region
    $region58: #{tpu_custom_call.1} parent=1 // pred_check
      _
    $region59: #{tpu_custom_call.1} parent=1 // pred_check_branch
      %1426 = sbr.rel (0) target = $region61
    $region60: #{tpu_custom_call.1} parent=1 // pred_region
      %1427 = dma.done [#allocation4], 256
    $region61: #{tpu_custom_call.1} parent=1 // pred_fallthru
      _
    %1428 = vsyncpa [#allocation4], 1

</llo_original>
